<compile_context>
chip_gen: v5e
topology: v5e:2x2
jax: 0.10.0
libtpu: 0.0.40
codegen_flags: <defaults>
</compile_context>

<pallas_src>
import math
import numpy as np
import jax
import jax.numpy as jnp
from jax.experimental import pallas as pl
from jax.experimental.pallas import tpu as pltpu

INPUT_DIM = 16        # input_dim
HIDDEN = 32           # hidden_size
NHEAD = 4             # num_attention_heads (cancels exactly for seq_len == 1)
NLAYERS = 3           # num_hidden_layers
INTERMEDIATE = 64     # intermediate_size
HEAD_HALF = HIDDEN // 2
LN_EPS = 1e-5
BATCH = 16
LANE = 128

# ---------------- packed-slab layout (static row offsets) -------------------
# Weight slab: each matrix stored (in_features, out_features), lane-padded to
# 128 and stacked along rows.  All row counts are multiples of 8.
W_FE = 0                                          # (INPUT_DIM, HIDDEN)
W_LAYER = W_FE + INPUT_DIM                        # per-layer block start
LAYER_W_ROWS = HIDDEN + HIDDEN + INTERMEDIATE     # w_vo | w_ff1 | w_ff2
W_H1 = W_LAYER + NLAYERS * LAYER_W_ROWS           # (HIDDEN, HEAD_HALF)
W_H2R = W_H1 + HIDDEN                             # (HEAD_HALF+INPUT_DIM, 1)
W_ROWS = W_H2R + (HEAD_HALF + INPUT_DIM)

# Vector slab: one 128-lane row per bias / LN scale / LN shift / PE row.
V_B_FE, V_G_FE, V_BE_FE, V_PE = 0, 1, 2, 3
V_LAYER = 4
LAYER_V_ROWS = 7                                  # ln1_g,ln1_b,b_vo,ln2_g,ln2_b,b_ff1,b_ff2
V_B_H1 = V_LAYER + NLAYERS * LAYER_V_ROWS
V_G_H = V_B_H1 + 1
V_BE_H = V_B_H1 + 2
V_B_H2R = V_B_H1 + 3
V_ROWS = ((V_B_H2R + 1 + 7) // 8) * 8             # pad rows to multiple of 8


def _layer_norm(x, gamma, beta):
    # var = E[x^2] - E[x]^2 -> the two reductions are independent (pipeline on XLU)
    mu = jnp.mean(x, axis=-1, keepdims=True)
    m2 = jnp.mean(x * x, axis=-1, keepdims=True)
    var = m2 - mu * mu
    return (x - mu) * jax.lax.rsqrt(var + LN_EPS) * gamma + beta


def _w(ref, off, rows, cols):
    """Load a (rows, cols) weight block from the packed weight slab."""
    return ref[pl.ds(off, rows), :][:, :cols]


def _v(ref, row, width):
    """Load a (1, width) row-vector from the packed vector slab."""
    return ref[pl.ds(row, 1), :][:, :width]


def brain_age_kernel(x_ref, w_ref, v_ref, out_ref):
    x_in = x_ref[...]                                               # (B, INPUT_DIM)

    # --- feature_encoder: Linear -> LayerNorm -> ReLU (Dropout == identity)
    h = jnp.dot(x_in, _w(w_ref, W_FE, INPUT_DIM, HIDDEN),
                preferred_element_type=jnp.float32) + _v(v_ref, V_B_FE, HIDDEN)
    h = _layer_norm(h, _v(v_ref, V_G_FE, HIDDEN), _v(v_ref, V_BE_FE, HIDDEN))
    h = jnp.maximum(h, 0.0)

    # --- positional encoding: seq_len == 1 -> add PE row 0 (= [0,1,0,1,...])
    h = h + _v(v_ref, V_PE, HIDDEN)

    # --- pre-norm (norm_first=True) transformer encoder layers, seq_len == 1
    for l in range(NLAYERS):
        bw = W_LAYER + l * LAYER_W_ROWS
        bv = V_LAYER + l * LAYER_V_ROWS

        # self-attention: softmax over a single key == 1, q/k cancel exactly,
        # value + output projections are folded offline into one (H,H) matmul.
        hn = _layer_norm(h, _v(v_ref, bv + 0, HIDDEN), _v(v_ref, bv + 1, HIDDEN))
        h = h + jnp.dot(hn, _w(w_ref, bw, HIDDEN, HIDDEN),
                        preferred_element_type=jnp.float32) + _v(v_ref, bv + 2, HIDDEN)

        # feed-forward: x = x + linear2(relu(linear1(norm2(x))))
        hn = _layer_norm(h, _v(v_ref, bv + 3, HIDDEN), _v(v_ref, bv + 4, HIDDEN))
        ff = jnp.dot(hn, _w(w_ref, bw + HIDDEN, HIDDEN, INTERMEDIATE),
                     preferred_element_type=jnp.float32) + _v(v_ref, bv + 5, INTERMEDIATE)
        ff = jnp.maximum(ff, 0.0)
        h = h + jnp.dot(ff, _w(w_ref, bw + 2 * HIDDEN, INTERMEDIATE, HIDDEN),
                        preferred_element_type=jnp.float32) + _v(v_ref, bv + 6, HIDDEN)

    # --- prediction_head: Linear -> LayerNorm -> ReLU -> Linear
    p = jnp.dot(h, _w(w_ref, W_H1, HIDDEN, HEAD_HALF),
                preferred_element_type=jnp.float32) + _v(v_ref, V_B_H1, HEAD_HALF)
    p = _layer_norm(p, _v(v_ref, V_G_H, HEAD_HALF), _v(v_ref, V_BE_H, HEAD_HALF))
    p = jnp.maximum(p, 0.0)

    # --- fused head output projection + input residual projection:
    #     [p | x_in] @ [w_h2 ; w_r] + (b_h2 + b_r)
    pr = jnp.concatenate([p, x_in], axis=1)                         # (B, 32)
    out = jnp.dot(pr, _w(w_ref, W_H2R, HEAD_HALF + INPUT_DIM, 1),
                  preferred_element_type=jnp.float32) + _v(v_ref, V_B_H2R, 1)
    out_ref[...] = out


def brain_age_forward(x, w_slab, v_slab):
    B = x.shape[0]
    # Single grid-free invocation: whole batch + both packed slabs live in VMEM.
    return pl.pallas_call(
        brain_age_kernel,
        out_shape=jax.ShapeDtypeStruct((B, 1), jnp.float32),
        in_specs=[
            pl.BlockSpec(memory_space=pltpu.MemorySpace.VMEM),
            pl.BlockSpec(memory_space=pltpu.MemorySpace.VMEM),
            pl.BlockSpec(memory_space=pltpu.MemorySpace.VMEM),
        ],
        out_specs=pl.BlockSpec(memory_space=pltpu.MemorySpace.VMEM),
    )(x, w_slab, v_slab)


# --------------------------- host-side packing -------------------------------
def pack_params(p):
    w_slab = np.zeros((W_ROWS, LANE), np.float32)
    v_slab = np.zeros((V_ROWS, LANE), np.float32)

    def put_w(off, a):
        a = np.asarray(a, np.float32)
        w_slab[off:off + a.shape[0], :a.shape[1]] = a

    def put_v(row, a):
        a = np.asarray(a, np.float32).reshape(-1)
        v_slab[row, :a.shape[0]] = a

    put_w(W_FE, p["w_fe"])
    put_v(V_B_FE, p["b_fe"]); put_v(V_G_FE, p["g_fe"])
    put_v(V_BE_FE, p["be_fe"]); put_v(V_PE, p["pe"])

    for l in range(NLAYERS):
        bw = W_LAYER + l * LAYER_W_ROWS
        bv = V_LAYER + l * LAYER_V_ROWS
        w_v = np.asarray(p["w_v"][l], np.float32)
        w_o = np.asarray(p["w_o"][l], np.float32)
        b_v = np.asarray(p["b_v"][l], np.float32)
        b_o = np.asarray(p["b_o"][l], np.float32)
        put_w(bw, w_v @ w_o)                       # folded value+output projection
        put_w(bw + HIDDEN, p["w_ff1"][l])
        put_w(bw + 2 * HIDDEN, p["w_ff2"][l])
        put_v(bv + 0, p["ln1_g"][l]); put_v(bv + 1, p["ln1_b"][l])
        put_v(bv + 2, b_v @ w_o + b_o)             # folded bias
        put_v(bv + 3, p["ln2_g"][l]); put_v(bv + 4, p["ln2_b"][l])
        put_v(bv + 5, p["b_ff1"][l]); put_v(bv + 6, p["b_ff2"][l])

    put_w(W_H1, p["w_h1"])
    put_v(V_B_H1, p["b_h1"]); put_v(V_G_H, p["g_h"]); put_v(V_BE_H, p["be_h"])
    put_w(W_H2R, np.concatenate([np.asarray(p["w_h2"], np.float32),
                                 np.asarray(p["w_r"], np.float32)], axis=0))
    put_v(V_B_H2R, np.asarray(p["b_h2"], np.float32).reshape(-1)
                   + np.asarray(p["b_r"], np.float32).reshape(-1))

    return jnp.asarray(w_slab), jnp.asarray(v_slab)


# --------------------------- reference & init --------------------------------
def brain_age_reference(x, p):
    """Plain-JAX reference of the original (un-folded) forward pass."""
    def ln(h, g, b):
        mu = jnp.mean(h, -1, keepdims=True)
        var = jnp.mean(jnp.square(h - mu), -1, keepdims=True)
        return (h - mu) / jnp.sqrt(var + LN_EPS) * g + b

    h = x @ p["w_fe"] + p["b_fe"]
    h = jnp.maximum(ln(h, p["g_fe"], p["be_fe"]), 0.0)
    h = h + p["pe"]
    for l in range(NLAYERS):
        hn = ln(h, p["ln1_g"][l], p["ln1_b"][l])
        v = hn @ p["w_v"][l] + p["b_v"][l]
        h = h + v @ p["w_o"][l] + p["b_o"][l]
        hn = ln(h, p["ln2_g"][l], p["ln2_b"][l])
        ff = jnp.maximum(hn @ p["w_ff1"][l] + p["b_ff1"][l], 0.0)
        h = h + ff @ p["w_ff2"][l] + p["b_ff2"][l]
    q = jnp.maximum(ln(h @ p["w_h1"] + p["b_h1"], p["g_h"], p["be_h"]), 0.0)
    out = q @ p["w_h2"] + p["b_h2"]
    return out + x @ p["w_r"] + p["b_r"]


def init_params(key):
    keys = iter(jax.random.split(key, 64))

    def dense(fan_in, fan_out):
        bound = 1.0 / math.sqrt(fan_in)
        w = jax.random.uniform(next(keys), (fan_in, fan_out), jnp.float32, -bound, bound)
        b = jax.random.uniform(next(keys), (1, fan_out), jnp.float32, -bound, bound)
        return w, b

    p = {}
    # feature_encoder
    p["w_fe"], p["b_fe"] = dense(INPUT_DIM, HIDDEN)
    p["g_fe"] = jnp.ones((1, HIDDEN), jnp.float32)
    p["be_fe"] = jnp.zeros((1, HIDDEN), jnp.float32)

    # PositionalEncoding row 0: sin(0 * div) = 0 (even idx), cos(0 * div) = 1 (odd idx)
    pe_row = np.zeros((1, HIDDEN), np.float32)
    pe_row[0, 1::2] = 1.0
    p["pe"] = jnp.asarray(pe_row)

    ln1_g, ln1_b, wv, bv, wo, bo = [], [], [], [], [], []
    ln2_g, ln2_b, w1, b1, w2, b2 = [], [], [], [], [], []
    for _ in range(NLAYERS):
        ln1_g.append(jnp.ones((1, HIDDEN), jnp.float32))
        ln1_b.append(jnp.zeros((1, HIDDEN), jnp.float32))
        # value projection = rows [2H:3H] of PyTorch's stacked in_proj; q/k
        # projections cancel exactly for seq_len == 1 and are therefore omitted.
        w, b = dense(HIDDEN, HIDDEN); wv.append(w); bv.append(b)
        w, b = dense(HIDDEN, HIDDEN); wo.append(w); bo.append(b)   # out_proj
        ln2_g.append(jnp.ones((1, HIDDEN), jnp.float32))
        ln2_b.append(jnp.zeros((1, HIDDEN), jnp.float32))
        w, b = dense(HIDDEN, INTERMEDIATE); w1.append(w); b1.append(b)
        w, b = dense(INTERMEDIATE, HIDDEN); w2.append(w); b2.append(b)
    p["ln1_g"], p["ln1_b"] = jnp.stack(ln1_g), jnp.stack(ln1_b)
    p["w_v"], p["b_v"] = jnp.stack(wv), jnp.stack(bv)
    p["w_o"], p["b_o"] = jnp.stack(wo), jnp.stack(bo)
    p["ln2_g"], p["ln2_b"] = jnp.stack(ln2_g), jnp.stack(ln2_b)
    p["w_ff1"], p["b_ff1"] = jnp.stack(w1), jnp.stack(b1)
    p["w_ff2"], p["b_ff2"] = jnp.stack(w2), jnp.stack(b2)

    # prediction_head
    p["w_h1"], p["b_h1"] = dense(HIDDEN, HEAD_HALF)
    p["g_h"] = jnp.ones((1, HEAD_HALF), jnp.float32)
    p["be_h"] = jnp.zeros((1, HEAD_HALF), jnp.float32)
    p["w_h2"], p["b_h2"] = dense(HEAD_HALF, 1)

    # residual
    p["w_r"], p["b_r"] = dense(INPUT_DIM, 1)
    return p


if __name__ == "__main__":
    key = jax.random.PRNGKey(0)
    pkey, xkey = jax.random.split(key)
    params = init_params(pkey)
    w_slab, v_slab = pack_params(params)
    x = jax.random.normal(xkey, (BATCH, INPUT_DIM), jnp.float32)

    out = jax.block_until_ready(brain_age_forward(x, w_slab, v_slab))
    ref = jax.block_until_ready(brain_age_reference(x, params))

    assert out.shape == (BATCH, 1) and out.dtype == jnp.float32
    np.testing.assert_allclose(np.asarray(out), np.asarray(ref), rtol=1e-2, atol=1e-3)
    print("KERNEL_OK")
</pallas_src>

<mosaic_0001>
module attributes {stable_mosaic.version = 11 : i64} {
  func.func @brain_age_kernel(%arg0: memref<16x16xf32, #tpu.memory_space<vmem>>, %arg1: memref<464x128xf32, #tpu.memory_space<vmem>>, %arg2: memref<32x128xf32, #tpu.memory_space<vmem>>, %arg3: memref<16x1xf32, #tpu.memory_space<vmem>>) attributes {dimension_semantics = [], scalar_prefetch = 0 : i64, scratch_operands = 0 : i64, tpu.core_type = #tpu.core_type<tc>} {
    %c0 = arith.constant 0 : index
    %c0_0 = arith.constant 0 : index
    %0 = vector.load %arg0[%c0, %c0_0] : memref<16x16xf32, #tpu.memory_space<vmem>>, vector<16x16xf32>
    %c0_1 = arith.constant 0 : index
    %c0_2 = arith.constant 0 : index
    %1 = vector.load %arg1[%c0_1, %c0_2] : memref<464x128xf32, #tpu.memory_space<vmem>>, vector<16x128xf32>
    %2 = vector.extract_strided_slice %1 {offsets = [0, 0], sizes = [16, 32], strides = [1, 1]} : vector<16x128xf32> to vector<16x32xf32>
    %cst = arith.constant dense<0.000000e+00> : vector<16x32xf32>
    %3 = tpu.matmul %0, %2, %cst {dimension_numbers = #tpu.dot_dimension_numbers<[1], [0], [0], [1], [0, 0, 1, 1], [], []>} : vector<16x16xf32>, vector<16x32xf32>, vector<16x32xf32> -> vector<16x32xf32>
    %c0_3 = arith.constant 0 : index
    %c0_4 = arith.constant 0 : index
    %4 = vector.load %arg2[%c0_3, %c0_4] : memref<32x128xf32, #tpu.memory_space<vmem>>, vector<1x128xf32>
    %5 = vector.extract_strided_slice %4 {offsets = [0, 0], sizes = [1, 32], strides = [1, 1]} : vector<1x128xf32> to vector<1x32xf32>
    %6 = vector.broadcast %5 : vector<1x32xf32> to vector<16x32xf32>
    %7 = arith.addf %3, %6 : vector<16x32xf32>
    %c1 = arith.constant 1 : index
    %c0_5 = arith.constant 0 : index
    %8 = vector.load %arg2[%c1, %c0_5] : memref<32x128xf32, #tpu.memory_space<vmem>>, vector<1x128xf32>
    %9 = vector.extract_strided_slice %8 {offsets = [0, 0], sizes = [1, 32], strides = [1, 1]} : vector<1x128xf32> to vector<1x32xf32>
    %c2 = arith.constant 2 : index
    %c0_6 = arith.constant 0 : index
    %10 = vector.load %arg2[%c2, %c0_6] : memref<32x128xf32, #tpu.memory_space<vmem>>, vector<1x128xf32>
    %11 = vector.extract_strided_slice %10 {offsets = [0, 0], sizes = [1, 32], strides = [1, 1]} : vector<1x128xf32> to vector<1x32xf32>
    %cst_7 = arith.constant dense<0.000000e+00> : vector<16xf32>
    %12 = vector.multi_reduction <add>, %7, %cst_7 [1] : vector<16x32xf32> to vector<16xf32>
    %13 = vector.shape_cast %12 : vector<16xf32> to vector<16x1xf32>
    %cst_8 = arith.constant 3.200000e+01 : f32
    %14 = vector.broadcast %cst_8 : f32 to vector<16x1xf32>
    %15 = arith.divf %13, %14 : vector<16x1xf32>
    %16 = arith.mulf %7, %7 : vector<16x32xf32>
    %cst_9 = arith.constant dense<0.000000e+00> : vector<16xf32>
    %17 = vector.multi_reduction <add>, %16, %cst_9 [1] : vector<16x32xf32> to vector<16xf32>
    %18 = vector.shape_cast %17 : vector<16xf32> to vector<16x1xf32>
    %cst_10 = arith.constant 3.200000e+01 : f32
    %19 = vector.broadcast %cst_10 : f32 to vector<16x1xf32>
    %20 = arith.divf %18, %19 : vector<16x1xf32>
    %21 = arith.mulf %15, %15 : vector<16x1xf32>
    %22 = arith.subf %20, %21 : vector<16x1xf32>
    %23 = vector.broadcast %15 : vector<16x1xf32> to vector<16x32xf32>
    %24 = arith.subf %7, %23 : vector<16x32xf32>
    %cst_11 = arith.constant 9.99999974E-6 : f32
    %25 = vector.broadcast %cst_11 : f32 to vector<16x1xf32>
    %26 = arith.addf %22, %25 : vector<16x1xf32>
    %27 = math.rsqrt %26 : vector<16x1xf32>
    %28 = vector.broadcast %27 : vector<16x1xf32> to vector<16x32xf32>
    %29 = arith.mulf %24, %28 : vector<16x32xf32>
    %30 = vector.broadcast %9 : vector<1x32xf32> to vector<16x32xf32>
    %31 = arith.mulf %29, %30 : vector<16x32xf32>
    %32 = vector.broadcast %11 : vector<1x32xf32> to vector<16x32xf32>
    %33 = arith.addf %31, %32 : vector<16x32xf32>
    %cst_12 = arith.constant 0.000000e+00 : f32
    %34 = vector.broadcast %cst_12 : f32 to vector<16x32xf32>
    %35 = arith.maximumf %33, %34 : vector<16x32xf32>
    %c3 = arith.constant 3 : index
    %c0_13 = arith.constant 0 : index
    %36 = vector.load %arg2[%c3, %c0_13] : memref<32x128xf32, #tpu.memory_space<vmem>>, vector<1x128xf32>
    %37 = vector.extract_strided_slice %36 {offsets = [0, 0], sizes = [1, 32], strides = [1, 1]} : vector<1x128xf32> to vector<1x32xf32>
    %38 = vector.broadcast %37 : vector<1x32xf32> to vector<16x32xf32>
    %39 = arith.addf %35, %38 : vector<16x32xf32>
    %c4 = arith.constant 4 : index
    %c0_14 = arith.constant 0 : index
    %40 = vector.load %arg2[%c4, %c0_14] : memref<32x128xf32, #tpu.memory_space<vmem>>, vector<1x128xf32>
    %41 = vector.extract_strided_slice %40 {offsets = [0, 0], sizes = [1, 32], strides = [1, 1]} : vector<1x128xf32> to vector<1x32xf32>
    %c5 = arith.constant 5 : index
    %c0_15 = arith.constant 0 : index
    %42 = vector.load %arg2[%c5, %c0_15] : memref<32x128xf32, #tpu.memory_space<vmem>>, vector<1x128xf32>
    %43 = vector.extract_strided_slice %42 {offsets = [0, 0], sizes = [1, 32], strides = [1, 1]} : vector<1x128xf32> to vector<1x32xf32>
    %cst_16 = arith.constant dense<0.000000e+00> : vector<16xf32>
    %44 = vector.multi_reduction <add>, %39, %cst_16 [1] : vector<16x32xf32> to vector<16xf32>
    %45 = vector.shape_cast %44 : vector<16xf32> to vector<16x1xf32>
    %cst_17 = arith.constant 3.200000e+01 : f32
    %46 = vector.broadcast %cst_17 : f32 to vector<16x1xf32>
    %47 = arith.divf %45, %46 : vector<16x1xf32>
    %48 = arith.mulf %39, %39 : vector<16x32xf32>
    %cst_18 = arith.constant dense<0.000000e+00> : vector<16xf32>
    %49 = vector.multi_reduction <add>, %48, %cst_18 [1] : vector<16x32xf32> to vector<16xf32>
    %50 = vector.shape_cast %49 : vector<16xf32> to vector<16x1xf32>
    %cst_19 = arith.constant 3.200000e+01 : f32
    %51 = vector.broadcast %cst_19 : f32 to vector<16x1xf32>
    %52 = arith.divf %50, %51 : vector<16x1xf32>
    %53 = arith.mulf %47, %47 : vector<16x1xf32>
    %54 = arith.subf %52, %53 : vector<16x1xf32>
    %55 = vector.broadcast %47 : vector<16x1xf32> to vector<16x32xf32>
    %56 = arith.subf %39, %55 : vector<16x32xf32>
    %cst_20 = arith.constant 9.99999974E-6 : f32
    %57 = vector.broadcast %cst_20 : f32 to vector<16x1xf32>
    %58 = arith.addf %54, %57 : vector<16x1xf32>
    %59 = math.rsqrt %58 : vector<16x1xf32>
    %60 = vector.broadcast %59 : vector<16x1xf32> to vector<16x32xf32>
    %61 = arith.mulf %56, %60 : vector<16x32xf32>
    %62 = vector.broadcast %41 : vector<1x32xf32> to vector<16x32xf32>
    %63 = arith.mulf %61, %62 : vector<16x32xf32>
    %64 = vector.broadcast %43 : vector<1x32xf32> to vector<16x32xf32>
    %65 = arith.addf %63, %64 : vector<16x32xf32>
    %c16 = arith.constant 16 : index
    %c0_21 = arith.constant 0 : index
    %66 = vector.load %arg1[%c16, %c0_21] : memref<464x128xf32, #tpu.memory_space<vmem>>, vector<32x128xf32>
    %67 = vector.extract_strided_slice %66 {offsets = [0, 0], sizes = [32, 32], strides = [1, 1]} : vector<32x128xf32> to vector<32x32xf32>
    %cst_22 = arith.constant dense<0.000000e+00> : vector<16x32xf32>
    %68 = tpu.matmul %65, %67, %cst_22 {dimension_numbers = #tpu.dot_dimension_numbers<[1], [0], [0], [1], [0, 0, 1, 1], [], []>} : vector<16x32xf32>, vector<32x32xf32>, vector<16x32xf32> -> vector<16x32xf32>
    %69 = arith.addf %39, %68 : vector<16x32xf32>
    %c6 = arith.constant 6 : index
    %c0_23 = arith.constant 0 : index
    %70 = vector.load %arg2[%c6, %c0_23] : memref<32x128xf32, #tpu.memory_space<vmem>>, vector<1x128xf32>
    %71 = vector.extract_strided_slice %70 {offsets = [0, 0], sizes = [1, 32], strides = [1, 1]} : vector<1x128xf32> to vector<1x32xf32>
    %72 = vector.broadcast %71 : vector<1x32xf32> to vector<16x32xf32>
    %73 = arith.addf %69, %72 : vector<16x32xf32>
    %c7 = arith.constant 7 : index
    %c0_24 = arith.constant 0 : index
    %74 = vector.load %arg2[%c7, %c0_24] : memref<32x128xf32, #tpu.memory_space<vmem>>, vector<1x128xf32>
    %75 = vector.extract_strided_slice %74 {offsets = [0, 0], sizes = [1, 32], strides = [1, 1]} : vector<1x128xf32> to vector<1x32xf32>
    %c8 = arith.constant 8 : index
    %c0_25 = arith.constant 0 : index
    %76 = vector.load %arg2[%c8, %c0_25] : memref<32x128xf32, #tpu.memory_space<vmem>>, vector<1x128xf32>
    %77 = vector.extract_strided_slice %76 {offsets = [0, 0], sizes = [1, 32], strides = [1, 1]} : vector<1x128xf32> to vector<1x32xf32>
    %cst_26 = arith.constant dense<0.000000e+00> : vector<16xf32>
    %78 = vector.multi_reduction <add>, %73, %cst_26 [1] : vector<16x32xf32> to vector<16xf32>
    %79 = vector.shape_cast %78 : vector<16xf32> to vector<16x1xf32>
    %cst_27 = arith.constant 3.200000e+01 : f32
    %80 = vector.broadcast %cst_27 : f32 to vector<16x1xf32>
    %81 = arith.divf %79, %80 : vector<16x1xf32>
    %82 = arith.mulf %73, %73 : vector<16x32xf32>
    %cst_28 = arith.constant dense<0.000000e+00> : vector<16xf32>
    %83 = vector.multi_reduction <add>, %82, %cst_28 [1] : vector<16x32xf32> to vector<16xf32>
    %84 = vector.shape_cast %83 : vector<16xf32> to vector<16x1xf32>
    %cst_29 = arith.constant 3.200000e+01 : f32
    %85 = vector.broadcast %cst_29 : f32 to vector<16x1xf32>
    %86 = arith.divf %84, %85 : vector<16x1xf32>
    %87 = arith.mulf %81, %81 : vector<16x1xf32>
    %88 = arith.subf %86, %87 : vector<16x1xf32>
    %89 = vector.broadcast %81 : vector<16x1xf32> to vector<16x32xf32>
    %90 = arith.subf %73, %89 : vector<16x32xf32>
    %cst_30 = arith.constant 9.99999974E-6 : f32
    %91 = vector.broadcast %cst_30 : f32 to vector<16x1xf32>
    %92 = arith.addf %88, %91 : vector<16x1xf32>
    %93 = math.rsqrt %92 : vector<16x1xf32>
    %94 = vector.broadcast %93 : vector<16x1xf32> to vector<16x32xf32>
    %95 = arith.mulf %90, %94 : vector<16x32xf32>
    %96 = vector.broadcast %75 : vector<1x32xf32> to vector<16x32xf32>
    %97 = arith.mulf %95, %96 : vector<16x32xf32>
    %98 = vector.broadcast %77 : vector<1x32xf32> to vector<16x32xf32>
    %99 = arith.addf %97, %98 : vector<16x32xf32>
    %c48 = arith.constant 48 : index
    %c0_31 = arith.constant 0 : index
    %100 = vector.load %arg1[%c48, %c0_31] : memref<464x128xf32, #tpu.memory_space<vmem>>, vector<32x128xf32>
    %101 = vector.extract_strided_slice %100 {offsets = [0, 0], sizes = [32, 64], strides = [1, 1]} : vector<32x128xf32> to vector<32x64xf32>
    %cst_32 = arith.constant dense<0.000000e+00> : vector<16x64xf32>
    %102 = tpu.matmul %99, %101, %cst_32 {dimension_numbers = #tpu.dot_dimension_numbers<[1], [0], [0], [1], [0, 0, 1, 1], [], []>} : vector<16x32xf32>, vector<32x64xf32>, vector<16x64xf32> -> vector<16x64xf32>
    %c9 = arith.constant 9 : index
    %c0_33 = arith.constant 0 : index
    %103 = vector.load %arg2[%c9, %c0_33] : memref<32x128xf32, #tpu.memory_space<vmem>>, vector<1x128xf32>
    %104 = vector.extract_strided_slice %103 {offsets = [0, 0], sizes = [1, 64], strides = [1, 1]} : vector<1x128xf32> to vector<1x64xf32>
    %105 = vector.broadcast %104 : vector<1x64xf32> to vector<16x64xf32>
    %106 = arith.addf %102, %105 : vector<16x64xf32>
    %cst_34 = arith.constant 0.000000e+00 : f32
    %107 = vector.broadcast %cst_34 : f32 to vector<16x64xf32>
    %108 = arith.maximumf %106, %107 : vector<16x64xf32>
    %c80 = arith.constant 80 : index
    %c0_35 = arith.constant 0 : index
    %109 = vector.load %arg1[%c80, %c0_35] : memref<464x128xf32, #tpu.memory_space<vmem>>, vector<64x128xf32>
    %110 = vector.extract_strided_slice %109 {offsets = [0, 0], sizes = [64, 32], strides = [1, 1]} : vector<64x128xf32> to vector<64x32xf32>
    %cst_36 = arith.constant dense<0.000000e+00> : vector<16x32xf32>
    %111 = tpu.matmul %108, %110, %cst_36 {dimension_numbers = #tpu.dot_dimension_numbers<[1], [0], [0], [1], [0, 0, 1, 1], [], []>} : vector<16x64xf32>, vector<64x32xf32>, vector<16x32xf32> -> vector<16x32xf32>
    %112 = arith.addf %73, %111 : vector<16x32xf32>
    %c10 = arith.constant 10 : index
    %c0_37 = arith.constant 0 : index
    %113 = vector.load %arg2[%c10, %c0_37] : memref<32x128xf32, #tpu.memory_space<vmem>>, vector<1x128xf32>
    %114 = vector.extract_strided_slice %113 {offsets = [0, 0], sizes = [1, 32], strides = [1, 1]} : vector<1x128xf32> to vector<1x32xf32>
    %115 = vector.broadcast %114 : vector<1x32xf32> to vector<16x32xf32>
    %116 = arith.addf %112, %115 : vector<16x32xf32>
    %c11 = arith.constant 11 : index
    %c0_38 = arith.constant 0 : index
    %117 = vector.load %arg2[%c11, %c0_38] : memref<32x128xf32, #tpu.memory_space<vmem>>, vector<1x128xf32>
    %118 = vector.extract_strided_slice %117 {offsets = [0, 0], sizes = [1, 32], strides = [1, 1]} : vector<1x128xf32> to vector<1x32xf32>
    %c12 = arith.constant 12 : index
    %c0_39 = arith.constant 0 : index
    %119 = vector.load %arg2[%c12, %c0_39] : memref<32x128xf32, #tpu.memory_space<vmem>>, vector<1x128xf32>
    %120 = vector.extract_strided_slice %119 {offsets = [0, 0], sizes = [1, 32], strides = [1, 1]} : vector<1x128xf32> to vector<1x32xf32>
    %cst_40 = arith.constant dense<0.000000e+00> : vector<16xf32>
    %121 = vector.multi_reduction <add>, %116, %cst_40 [1] : vector<16x32xf32> to vector<16xf32>
    %122 = vector.shape_cast %121 : vector<16xf32> to vector<16x1xf32>
    %cst_41 = arith.constant 3.200000e+01 : f32
    %123 = vector.broadcast %cst_41 : f32 to vector<16x1xf32>
    %124 = arith.divf %122, %123 : vector<16x1xf32>
    %125 = arith.mulf %116, %116 : vector<16x32xf32>
    %cst_42 = arith.constant dense<0.000000e+00> : vector<16xf32>
    %126 = vector.multi_reduction <add>, %125, %cst_42 [1] : vector<16x32xf32> to vector<16xf32>
    %127 = vector.shape_cast %126 : vector<16xf32> to vector<16x1xf32>
    %cst_43 = arith.constant 3.200000e+01 : f32
    %128 = vector.broadcast %cst_43 : f32 to vector<16x1xf32>
    %129 = arith.divf %127, %128 : vector<16x1xf32>
    %130 = arith.mulf %124, %124 : vector<16x1xf32>
    %131 = arith.subf %129, %130 : vector<16x1xf32>
    %132 = vector.broadcast %124 : vector<16x1xf32> to vector<16x32xf32>
    %133 = arith.subf %116, %132 : vector<16x32xf32>
    %cst_44 = arith.constant 9.99999974E-6 : f32
    %134 = vector.broadcast %cst_44 : f32 to vector<16x1xf32>
    %135 = arith.addf %131, %134 : vector<16x1xf32>
    %136 = math.rsqrt %135 : vector<16x1xf32>
    %137 = vector.broadcast %136 : vector<16x1xf32> to vector<16x32xf32>
    %138 = arith.mulf %133, %137 : vector<16x32xf32>
    %139 = vector.broadcast %118 : vector<1x32xf32> to vector<16x32xf32>
    %140 = arith.mulf %138, %139 : vector<16x32xf32>
    %141 = vector.broadcast %120 : vector<1x32xf32> to vector<16x32xf32>
    %142 = arith.addf %140, %141 : vector<16x32xf32>
    %c144 = arith.constant 144 : index
    %c0_45 = arith.constant 0 : index
    %143 = vector.load %arg1[%c144, %c0_45] : memref<464x128xf32, #tpu.memory_space<vmem>>, vector<32x128xf32>
    %144 = vector.extract_strided_slice %143 {offsets = [0, 0], sizes = [32, 32], strides = [1, 1]} : vector<32x128xf32> to vector<32x32xf32>
    %cst_46 = arith.constant dense<0.000000e+00> : vector<16x32xf32>
    %145 = tpu.matmul %142, %144, %cst_46 {dimension_numbers = #tpu.dot_dimension_numbers<[1], [0], [0], [1], [0, 0, 1, 1], [], []>} : vector<16x32xf32>, vector<32x32xf32>, vector<16x32xf32> -> vector<16x32xf32>
    %146 = arith.addf %116, %145 : vector<16x32xf32>
    %c13 = arith.constant 13 : index
    %c0_47 = arith.constant 0 : index
    %147 = vector.load %arg2[%c13, %c0_47] : memref<32x128xf32, #tpu.memory_space<vmem>>, vector<1x128xf32>
    %148 = vector.extract_strided_slice %147 {offsets = [0, 0], sizes = [1, 32], strides = [1, 1]} : vector<1x128xf32> to vector<1x32xf32>
    %149 = vector.broadcast %148 : vector<1x32xf32> to vector<16x32xf32>
    %150 = arith.addf %146, %149 : vector<16x32xf32>
    %c14 = arith.constant 14 : index
    %c0_48 = arith.constant 0 : index
    %151 = vector.load %arg2[%c14, %c0_48] : memref<32x128xf32, #tpu.memory_space<vmem>>, vector<1x128xf32>
    %152 = vector.extract_strided_slice %151 {offsets = [0, 0], sizes = [1, 32], strides = [1, 1]} : vector<1x128xf32> to vector<1x32xf32>
    %c15 = arith.constant 15 : index
    %c0_49 = arith.constant 0 : index
    %153 = vector.load %arg2[%c15, %c0_49] : memref<32x128xf32, #tpu.memory_space<vmem>>, vector<1x128xf32>
    %154 = vector.extract_strided_slice %153 {offsets = [0, 0], sizes = [1, 32], strides = [1, 1]} : vector<1x128xf32> to vector<1x32xf32>
    %cst_50 = arith.constant dense<0.000000e+00> : vector<16xf32>
    %155 = vector.multi_reduction <add>, %150, %cst_50 [1] : vector<16x32xf32> to vector<16xf32>
    %156 = vector.shape_cast %155 : vector<16xf32> to vector<16x1xf32>
    %cst_51 = arith.constant 3.200000e+01 : f32
    %157 = vector.broadcast %cst_51 : f32 to vector<16x1xf32>
    %158 = arith.divf %156, %157 : vector<16x1xf32>
    %159 = arith.mulf %150, %150 : vector<16x32xf32>
    %cst_52 = arith.constant dense<0.000000e+00> : vector<16xf32>
    %160 = vector.multi_reduction <add>, %159, %cst_52 [1] : vector<16x32xf32> to vector<16xf32>
    %161 = vector.shape_cast %160 : vector<16xf32> to vector<16x1xf32>
    %cst_53 = arith.constant 3.200000e+01 : f32
    %162 = vector.broadcast %cst_53 : f32 to vector<16x1xf32>
    %163 = arith.divf %161, %162 : vector<16x1xf32>
    %164 = arith.mulf %158, %158 : vector<16x1xf32>
    %165 = arith.subf %163, %164 : vector<16x1xf32>
    %166 = vector.broadcast %158 : vector<16x1xf32> to vector<16x32xf32>
    %167 = arith.subf %150, %166 : vector<16x32xf32>
    %cst_54 = arith.constant 9.99999974E-6 : f32
    %168 = vector.broadcast %cst_54 : f32 to vector<16x1xf32>
    %169 = arith.addf %165, %168 : vector<16x1xf32>
    %170 = math.rsqrt %169 : vector<16x1xf32>
    %171 = vector.broadcast %170 : vector<16x1xf32> to vector<16x32xf32>
    %172 = arith.mulf %167, %171 : vector<16x32xf32>
    %173 = vector.broadcast %152 : vector<1x32xf32> to vector<16x32xf32>
    %174 = arith.mulf %172, %173 : vector<16x32xf32>
    %175 = vector.broadcast %154 : vector<1x32xf32> to vector<16x32xf32>
    %176 = arith.addf %174, %175 : vector<16x32xf32>
    %c176 = arith.constant 176 : index
    %c0_55 = arith.constant 0 : index
    %177 = vector.load %arg1[%c176, %c0_55] : memref<464x128xf32, #tpu.memory_space<vmem>>, vector<32x128xf32>
    %178 = vector.extract_strided_slice %177 {offsets = [0, 0], sizes = [32, 64], strides = [1, 1]} : vector<32x128xf32> to vector<32x64xf32>
    %cst_56 = arith.constant dense<0.000000e+00> : vector<16x64xf32>
    %179 = tpu.matmul %176, %178, %cst_56 {dimension_numbers = #tpu.dot_dimension_numbers<[1], [0], [0], [1], [0, 0, 1, 1], [], []>} : vector<16x32xf32>, vector<32x64xf32>, vector<16x64xf32> -> vector<16x64xf32>
    %c16_57 = arith.constant 16 : index
    %c0_58 = arith.constant 0 : index
    %180 = vector.load %arg2[%c16_57, %c0_58] : memref<32x128xf32, #tpu.memory_space<vmem>>, vector<1x128xf32>
    %181 = vector.extract_strided_slice %180 {offsets = [0, 0], sizes = [1, 64], strides = [1, 1]} : vector<1x128xf32> to vector<1x64xf32>
    %182 = vector.broadcast %181 : vector<1x64xf32> to vector<16x64xf32>
    %183 = arith.addf %179, %182 : vector<16x64xf32>
    %cst_59 = arith.constant 0.000000e+00 : f32
    %184 = vector.broadcast %cst_59 : f32 to vector<16x64xf32>
    %185 = arith.maximumf %183, %184 : vector<16x64xf32>
    %c208 = arith.constant 208 : index
    %c0_60 = arith.constant 0 : index
    %186 = vector.load %arg1[%c208, %c0_60] : memref<464x128xf32, #tpu.memory_space<vmem>>, vector<64x128xf32>
    %187 = vector.extract_strided_slice %186 {offsets = [0, 0], sizes = [64, 32], strides = [1, 1]} : vector<64x128xf32> to vector<64x32xf32>
    %cst_61 = arith.constant dense<0.000000e+00> : vector<16x32xf32>
    %188 = tpu.matmul %185, %187, %cst_61 {dimension_numbers = #tpu.dot_dimension_numbers<[1], [0], [0], [1], [0, 0, 1, 1], [], []>} : vector<16x64xf32>, vector<64x32xf32>, vector<16x32xf32> -> vector<16x32xf32>
    %189 = arith.addf %150, %188 : vector<16x32xf32>
    %c17 = arith.constant 17 : index
    %c0_62 = arith.constant 0 : index
    %190 = vector.load %arg2[%c17, %c0_62] : memref<32x128xf32, #tpu.memory_space<vmem>>, vector<1x128xf32>
    %191 = vector.extract_strided_slice %190 {offsets = [0, 0], sizes = [1, 32], strides = [1, 1]} : vector<1x128xf32> to vector<1x32xf32>
    %192 = vector.broadcast %191 : vector<1x32xf32> to vector<16x32xf32>
    %193 = arith.addf %189, %192 : vector<16x32xf32>
    %c18 = arith.constant 18 : index
    %c0_63 = arith.constant 0 : index
    %194 = vector.load %arg2[%c18, %c0_63] : memref<32x128xf32, #tpu.memory_space<vmem>>, vector<1x128xf32>
    %195 = vector.extract_strided_slice %194 {offsets = [0, 0], sizes = [1, 32], strides = [1, 1]} : vector<1x128xf32> to vector<1x32xf32>
    %c19 = arith.constant 19 : index
    %c0_64 = arith.constant 0 : index
    %196 = vector.load %arg2[%c19, %c0_64] : memref<32x128xf32, #tpu.memory_space<vmem>>, vector<1x128xf32>
    %197 = vector.extract_strided_slice %196 {offsets = [0, 0], sizes = [1, 32], strides = [1, 1]} : vector<1x128xf32> to vector<1x32xf32>
    %cst_65 = arith.constant dense<0.000000e+00> : vector<16xf32>
    %198 = vector.multi_reduction <add>, %193, %cst_65 [1] : vector<16x32xf32> to vector<16xf32>
    %199 = vector.shape_cast %198 : vector<16xf32> to vector<16x1xf32>
    %cst_66 = arith.constant 3.200000e+01 : f32
    %200 = vector.broadcast %cst_66 : f32 to vector<16x1xf32>
    %201 = arith.divf %199, %200 : vector<16x1xf32>
    %202 = arith.mulf %193, %193 : vector<16x32xf32>
    %cst_67 = arith.constant dense<0.000000e+00> : vector<16xf32>
    %203 = vector.multi_reduction <add>, %202, %cst_67 [1] : vector<16x32xf32> to vector<16xf32>
    %204 = vector.shape_cast %203 : vector<16xf32> to vector<16x1xf32>
    %cst_68 = arith.constant 3.200000e+01 : f32
    %205 = vector.broadcast %cst_68 : f32 to vector<16x1xf32>
    %206 = arith.divf %204, %205 : vector<16x1xf32>
    %207 = arith.mulf %201, %201 : vector<16x1xf32>
    %208 = arith.subf %206, %207 : vector<16x1xf32>
    %209 = vector.broadcast %201 : vector<16x1xf32> to vector<16x32xf32>
    %210 = arith.subf %193, %209 : vector<16x32xf32>
    %cst_69 = arith.constant 9.99999974E-6 : f32
    %211 = vector.broadcast %cst_69 : f32 to vector<16x1xf32>
    %212 = arith.addf %208, %211 : vector<16x1xf32>
    %213 = math.rsqrt %212 : vector<16x1xf32>
    %214 = vector.broadcast %213 : vector<16x1xf32> to vector<16x32xf32>
    %215 = arith.mulf %210, %214 : vector<16x32xf32>
    %216 = vector.broadcast %195 : vector<1x32xf32> to vector<16x32xf32>
    %217 = arith.mulf %215, %216 : vector<16x32xf32>
    %218 = vector.broadcast %197 : vector<1x32xf32> to vector<16x32xf32>
    %219 = arith.addf %217, %218 : vector<16x32xf32>
    %c272 = arith.constant 272 : index
    %c0_70 = arith.constant 0 : index
    %220 = vector.load %arg1[%c272, %c0_70] : memref<464x128xf32, #tpu.memory_space<vmem>>, vector<32x128xf32>
    %221 = vector.extract_strided_slice %220 {offsets = [0, 0], sizes = [32, 32], strides = [1, 1]} : vector<32x128xf32> to vector<32x32xf32>
    %cst_71 = arith.constant dense<0.000000e+00> : vector<16x32xf32>
    %222 = tpu.matmul %219, %221, %cst_71 {dimension_numbers = #tpu.dot_dimension_numbers<[1], [0], [0], [1], [0, 0, 1, 1], [], []>} : vector<16x32xf32>, vector<32x32xf32>, vector<16x32xf32> -> vector<16x32xf32>
    %223 = arith.addf %193, %222 : vector<16x32xf32>
    %c20 = arith.constant 20 : index
    %c0_72 = arith.constant 0 : index
    %224 = vector.load %arg2[%c20, %c0_72] : memref<32x128xf32, #tpu.memory_space<vmem>>, vector<1x128xf32>
    %225 = vector.extract_strided_slice %224 {offsets = [0, 0], sizes = [1, 32], strides = [1, 1]} : vector<1x128xf32> to vector<1x32xf32>
    %226 = vector.broadcast %225 : vector<1x32xf32> to vector<16x32xf32>
    %227 = arith.addf %223, %226 : vector<16x32xf32>
    %c21 = arith.constant 21 : index
    %c0_73 = arith.constant 0 : index
    %228 = vector.load %arg2[%c21, %c0_73] : memref<32x128xf32, #tpu.memory_space<vmem>>, vector<1x128xf32>
    %229 = vector.extract_strided_slice %228 {offsets = [0, 0], sizes = [1, 32], strides = [1, 1]} : vector<1x128xf32> to vector<1x32xf32>
    %c22 = arith.constant 22 : index
    %c0_74 = arith.constant 0 : index
    %230 = vector.load %arg2[%c22, %c0_74] : memref<32x128xf32, #tpu.memory_space<vmem>>, vector<1x128xf32>
    %231 = vector.extract_strided_slice %230 {offsets = [0, 0], sizes = [1, 32], strides = [1, 1]} : vector<1x128xf32> to vector<1x32xf32>
    %cst_75 = arith.constant dense<0.000000e+00> : vector<16xf32>
    %232 = vector.multi_reduction <add>, %227, %cst_75 [1] : vector<16x32xf32> to vector<16xf32>
    %233 = vector.shape_cast %232 : vector<16xf32> to vector<16x1xf32>
    %cst_76 = arith.constant 3.200000e+01 : f32
    %234 = vector.broadcast %cst_76 : f32 to vector<16x1xf32>
    %235 = arith.divf %233, %234 : vector<16x1xf32>
    %236 = arith.mulf %227, %227 : vector<16x32xf32>
    %cst_77 = arith.constant dense<0.000000e+00> : vector<16xf32>
    %237 = vector.multi_reduction <add>, %236, %cst_77 [1] : vector<16x32xf32> to vector<16xf32>
    %238 = vector.shape_cast %237 : vector<16xf32> to vector<16x1xf32>
    %cst_78 = arith.constant 3.200000e+01 : f32
    %239 = vector.broadcast %cst_78 : f32 to vector<16x1xf32>
    %240 = arith.divf %238, %239 : vector<16x1xf32>
    %241 = arith.mulf %235, %235 : vector<16x1xf32>
    %242 = arith.subf %240, %241 : vector<16x1xf32>
    %243 = vector.broadcast %235 : vector<16x1xf32> to vector<16x32xf32>
    %244 = arith.subf %227, %243 : vector<16x32xf32>
    %cst_79 = arith.constant 9.99999974E-6 : f32
    %245 = vector.broadcast %cst_79 : f32 to vector<16x1xf32>
    %246 = arith.addf %242, %245 : vector<16x1xf32>
    %247 = math.rsqrt %246 : vector<16x1xf32>
    %248 = vector.broadcast %247 : vector<16x1xf32> to vector<16x32xf32>
    %249 = arith.mulf %244, %248 : vector<16x32xf32>
    %250 = vector.broadcast %229 : vector<1x32xf32> to vector<16x32xf32>
    %251 = arith.mulf %249, %250 : vector<16x32xf32>
    %252 = vector.broadcast %231 : vector<1x32xf32> to vector<16x32xf32>
    %253 = arith.addf %251, %252 : vector<16x32xf32>
    %c304 = arith.constant 304 : index
    %c0_80 = arith.constant 0 : index
    %254 = vector.load %arg1[%c304, %c0_80] : memref<464x128xf32, #tpu.memory_space<vmem>>, vector<32x128xf32>
    %255 = vector.extract_strided_slice %254 {offsets = [0, 0], sizes = [32, 64], strides = [1, 1]} : vector<32x128xf32> to vector<32x64xf32>
    %cst_81 = arith.constant dense<0.000000e+00> : vector<16x64xf32>
    %256 = tpu.matmul %253, %255, %cst_81 {dimension_numbers = #tpu.dot_dimension_numbers<[1], [0], [0], [1], [0, 0, 1, 1], [], []>} : vector<16x32xf32>, vector<32x64xf32>, vector<16x64xf32> -> vector<16x64xf32>
    %c23 = arith.constant 23 : index
    %c0_82 = arith.constant 0 : index
    %257 = vector.load %arg2[%c23, %c0_82] : memref<32x128xf32, #tpu.memory_space<vmem>>, vector<1x128xf32>
    %258 = vector.extract_strided_slice %257 {offsets = [0, 0], sizes = [1, 64], strides = [1, 1]} : vector<1x128xf32> to vector<1x64xf32>
    %259 = vector.broadcast %258 : vector<1x64xf32> to vector<16x64xf32>
    %260 = arith.addf %256, %259 : vector<16x64xf32>
    %cst_83 = arith.constant 0.000000e+00 : f32
    %261 = vector.broadcast %cst_83 : f32 to vector<16x64xf32>
    %262 = arith.maximumf %260, %261 : vector<16x64xf32>
    %c336 = arith.constant 336 : index
    %c0_84 = arith.constant 0 : index
    %263 = vector.load %arg1[%c336, %c0_84] : memref<464x128xf32, #tpu.memory_space<vmem>>, vector<64x128xf32>
    %264 = vector.extract_strided_slice %263 {offsets = [0, 0], sizes = [64, 32], strides = [1, 1]} : vector<64x128xf32> to vector<64x32xf32>
    %cst_85 = arith.constant dense<0.000000e+00> : vector<16x32xf32>
    %265 = tpu.matmul %262, %264, %cst_85 {dimension_numbers = #tpu.dot_dimension_numbers<[1], [0], [0], [1], [0, 0, 1, 1], [], []>} : vector<16x64xf32>, vector<64x32xf32>, vector<16x32xf32> -> vector<16x32xf32>
    %266 = arith.addf %227, %265 : vector<16x32xf32>
    %c24 = arith.constant 24 : index
    %c0_86 = arith.constant 0 : index
    %267 = vector.load %arg2[%c24, %c0_86] : memref<32x128xf32, #tpu.memory_space<vmem>>, vector<1x128xf32>
    %268 = vector.extract_strided_slice %267 {offsets = [0, 0], sizes = [1, 32], strides = [1, 1]} : vector<1x128xf32> to vector<1x32xf32>
    %269 = vector.broadcast %268 : vector<1x32xf32> to vector<16x32xf32>
    %270 = arith.addf %266, %269 : vector<16x32xf32>
    %c400 = arith.constant 400 : index
    %c0_87 = arith.constant 0 : index
    %271 = vector.load %arg1[%c400, %c0_87] : memref<464x128xf32, #tpu.memory_space<vmem>>, vector<32x128xf32>
    %272 = vector.extract_strided_slice %271 {offsets = [0, 0], sizes = [32, 16], strides = [1, 1]} : vector<32x128xf32> to vector<32x16xf32>
    %cst_88 = arith.constant dense<0.000000e+00> : vector<16x16xf32>
    %273 = tpu.matmul %270, %272, %cst_88 {dimension_numbers = #tpu.dot_dimension_numbers<[1], [0], [0], [1], [0, 0, 1, 1], [], []>} : vector<16x32xf32>, vector<32x16xf32>, vector<16x16xf32> -> vector<16x16xf32>
    %c25 = arith.constant 25 : index
    %c0_89 = arith.constant 0 : index
    %274 = vector.load %arg2[%c25, %c0_89] : memref<32x128xf32, #tpu.memory_space<vmem>>, vector<1x128xf32>
    %275 = vector.extract_strided_slice %274 {offsets = [0, 0], sizes = [1, 16], strides = [1, 1]} : vector<1x128xf32> to vector<1x16xf32>
    %276 = vector.broadcast %275 : vector<1x16xf32> to vector<16x16xf32>
    %277 = arith.addf %273, %276 : vector<16x16xf32>
    %c26 = arith.constant 26 : index
    %c0_90 = arith.constant 0 : index
    %278 = vector.load %arg2[%c26, %c0_90] : memref<32x128xf32, #tpu.memory_space<vmem>>, vector<1x128xf32>
    %279 = vector.extract_strided_slice %278 {offsets = [0, 0], sizes = [1, 16], strides = [1, 1]} : vector<1x128xf32> to vector<1x16xf32>
    %c27 = arith.constant 27 : index
    %c0_91 = arith.constant 0 : index
    %280 = vector.load %arg2[%c27, %c0_91] : memref<32x128xf32, #tpu.memory_space<vmem>>, vector<1x128xf32>
    %281 = vector.extract_strided_slice %280 {offsets = [0, 0], sizes = [1, 16], strides = [1, 1]} : vector<1x128xf32> to vector<1x16xf32>
    %cst_92 = arith.constant dense<0.000000e+00> : vector<16xf32>
    %282 = vector.multi_reduction <add>, %277, %cst_92 [1] : vector<16x16xf32> to vector<16xf32>
    %283 = vector.shape_cast %282 : vector<16xf32> to vector<16x1xf32>
    %cst_93 = arith.constant 1.600000e+01 : f32
    %284 = vector.broadcast %cst_93 : f32 to vector<16x1xf32>
    %285 = arith.divf %283, %284 : vector<16x1xf32>
    %286 = arith.mulf %277, %277 : vector<16x16xf32>
    %cst_94 = arith.constant dense<0.000000e+00> : vector<16xf32>
    %287 = vector.multi_reduction <add>, %286, %cst_94 [1] : vector<16x16xf32> to vector<16xf32>
    %288 = vector.shape_cast %287 : vector<16xf32> to vector<16x1xf32>
    %cst_95 = arith.constant 1.600000e+01 : f32
    %289 = vector.broadcast %cst_95 : f32 to vector<16x1xf32>
    %290 = arith.divf %288, %289 : vector<16x1xf32>
    %291 = arith.mulf %285, %285 : vector<16x1xf32>
    %292 = arith.subf %290, %291 : vector<16x1xf32>
    %293 = vector.broadcast %285 : vector<16x1xf32> to vector<16x16xf32>
    %294 = arith.subf %277, %293 : vector<16x16xf32>
    %cst_96 = arith.constant 9.99999974E-6 : f32
    %295 = vector.broadcast %cst_96 : f32 to vector<16x1xf32>
    %296 = arith.addf %292, %295 : vector<16x1xf32>
    %297 = math.rsqrt %296 : vector<16x1xf32>
    %298 = vector.broadcast %297 : vector<16x1xf32> to vector<16x16xf32>
    %299 = arith.mulf %294, %298 : vector<16x16xf32>
    %300 = vector.broadcast %279 : vector<1x16xf32> to vector<16x16xf32>
    %301 = arith.mulf %299, %300 : vector<16x16xf32>
    %302 = vector.broadcast %281 : vector<1x16xf32> to vector<16x16xf32>
    %303 = arith.addf %301, %302 : vector<16x16xf32>
    %cst_97 = arith.constant 0.000000e+00 : f32
    %304 = vector.broadcast %cst_97 : f32 to vector<16x16xf32>
    %305 = arith.maximumf %303, %304 : vector<16x16xf32>
    %306 = tpu.concatenate %305, %0 in 1 : vector<16x16xf32>, vector<16x16xf32> -> vector<16x32xf32>
    %c432 = arith.constant 432 : index
    %c0_98 = arith.constant 0 : index
    %307 = vector.load %arg1[%c432, %c0_98] : memref<464x128xf32, #tpu.memory_space<vmem>>, vector<32x128xf32>
    %308 = vector.extract_strided_slice %307 {offsets = [0, 0], sizes = [32, 1], strides = [1, 1]} : vector<32x128xf32> to vector<32x1xf32>
    %cst_99 = arith.constant dense<0.000000e+00> : vector<16x1xf32>
    %309 = tpu.matmul %306, %308, %cst_99 {dimension_numbers = #tpu.dot_dimension_numbers<[1], [0], [0], [1], [0, 0, 1, 1], [], []>} : vector<16x32xf32>, vector<32x1xf32>, vector<16x1xf32> -> vector<16x1xf32>
    %c28 = arith.constant 28 : index
    %c0_100 = arith.constant 0 : index
    %310 = vector.load %arg2[%c28, %c0_100] : memref<32x128xf32, #tpu.memory_space<vmem>>, vector<1x128xf32>
    %311 = vector.extract_strided_slice %310 {offsets = [0, 0], sizes = [1, 1], strides = [1, 1]} : vector<1x128xf32> to vector<1x1xf32>
    %312 = vector.broadcast %311 : vector<1x1xf32> to vector<16x1xf32>
    %313 = arith.addf %309, %312 : vector<16x1xf32>
    %c0_101 = arith.constant 0 : index
    %c0_102 = arith.constant 0 : index
    %314 = vector.load %arg3[%c0_101, %c0_102] : memref<16x1xf32, #tpu.memory_space<vmem>>, vector<16x1xf32>
    tpu.vector_store %arg3[%c0_101, %c0_102], %313 {strides = array<i32>} : memref<16x1xf32, #tpu.memory_space<vmem>>, vector<16x1xf32>,
    return
  }
}

</mosaic_0001>

<llo_original>
// kernel: tpu_custom_call.1
$region0: #{tpu_custom_call.1}
  #allocation0 [shape = 'u32[]', space=smem, size = 0x4, offset = 0x4, fixed_abs, tag = 'smem constant byte address 0x4 - core index']
  #allocation1 [shape = 'u32[72,128]{1,0:T(1,128)}', space=vmem, size = 0x9000, scoped, tag = 'internal scratch']
  %s0 = inlined_call_operand.hbm [shape: f32[16,16], index: 0, kind: input, shape index: {}]
  %s1 = inlined_call_operand.hbm [shape: f32[464,128], index: 1, kind: input, shape index: {}]
  %s2 = inlined_call_operand.hbm [shape: f32[32,128], index: 2, kind: input, shape index: {}]
  %s3 = inlined_call_operand.vmem [shape: f32[16,1], index: 3, kind: output, shape index: {}]
  %s4 = sld [smem:[#allocation0]]
  $region34: #{tpu_custom_call.1} parent=0
    _
  %s6 = ssub.s32 1, %s4
  %s7 = scalar_select 0, %s6, %s4
  $region1: #{tpu_custom_call.1} parent=0
    #allocation2 [shape = 'u8[8192]{0}', space=vmem, size = 0x2000, scoped, tag = 'input window, operand 0, single buffered']
    #allocation3 [shape = 's32[1]{0}', space=sflag, size = 0x4, scoped, tag = 'scoped memory for tpu_custom_call.1']
    #allocation4 [shape = 'u8[237568]{0}', space=vmem, size = 0x3a000, scoped, tag = 'input window, operand 1, single buffered']
    #allocation5 [shape = 's32[1]{0}', space=sflag, size = 0x4, scoped, tag = 'scoped memory for tpu_custom_call.1']
    #allocation6 [shape = 'u8[16384]{0}', space=vmem, size = 0x4000, scoped, tag = 'input window, operand 2, single buffered']
    %8 = vsyncpa [#allocation3], 0
    %9 = vsyncpa [#allocation5], 0
    // Predicated region
    $region2: #{tpu_custom_call.1} parent=1 // pred_check
      _
    $region3: #{tpu_custom_call.1} parent=1 // pred_check_branch
      %11 = sbr.rel (0) target = $region5
    $region4: #{tpu_custom_call.1} parent=1 // pred_region
      %13 = vsyncadd [#allocation3], 0
      %s14 = sshll.u32 %s0, 4
      %s15 = int_to_ptr.hbm [resolvable:$true] %s14
      %s16 = sshll.u32 [#allocation2], 4
      %s17 = int_to_ptr.vmem [resolvable:$true] %s16
      %22 = dma.hbm_to_vmem [thread:$0]  %s15, 256, %s17, [#allocation3], 128, 128, 8
    $region5: #{tpu_custom_call.1} parent=1 // pred_fallthru
      _
    // Predicated region
    $region6: #{tpu_custom_call.1} parent=1 // pred_check
      _
    $region7: #{tpu_custom_call.1} parent=1 // pred_check_branch
      %24 = sbr.rel (0) target = $region9
    $region8: #{tpu_custom_call.1} parent=1 // pred_region
      %26 = vsyncadd [#allocation5], 0
      %s27 = sshll.u32 %s1, 4
      %s28 = int_to_ptr.hbm [resolvable:$true] %s27
      %s29 = sshll.u32 [#allocation4], 4
      %s30 = int_to_ptr.vmem [resolvable:$true] %s29
      %35 = dma.hbm_to_vmem [thread:$0]  %s28, 7424, %s30, [#allocation5], 128, 128, 8
    $region9: #{tpu_custom_call.1} parent=1 // pred_fallthru
      _
    // Predicated region
    $region10: #{tpu_custom_call.1} parent=1 // pred_check
      _
    $region11: #{tpu_custom_call.1} parent=1 // pred_check_branch
      %37 = sbr.rel (0) target = $region13
    $region12: #{tpu_custom_call.1} parent=1 // pred_region
      %39 = vsyncadd [#allocation5], 0
      %s40 = sshll.u32 %s2, 4
      %s41 = int_to_ptr.hbm [resolvable:$true] %s40
      %s42 = sshll.u32 [#allocation6], 4
      %s43 = int_to_ptr.vmem [resolvable:$true] %s42
      %48 = dma.hbm_to_vmem [thread:$0]  %s41, 512, %s43, [#allocation5], 128, 128, 8
    $region13: #{tpu_custom_call.1} parent=1 // pred_fallthru
      _
    // Predicated region
    $region14: #{tpu_custom_call.1} parent=1 // pred_check
      _
    $region15: #{tpu_custom_call.1} parent=1 // pred_check_branch
      %50 = sbr.rel (0) target = $region17
    $region16: #{tpu_custom_call.1} parent=1 // pred_region
      %52 = dma.done [#allocation3], 256
    $region17: #{tpu_custom_call.1} parent=1 // pred_fallthru
      _
    // Predicated region
    $region18: #{tpu_custom_call.1} parent=1 // pred_check
      _
    $region19: #{tpu_custom_call.1} parent=1 // pred_check_branch
      %54 = sbr.rel (0) target = $region21
    $region20: #{tpu_custom_call.1} parent=1 // pred_region
      %56 = dma.done [#allocation5], 7424
    $region21: #{tpu_custom_call.1} parent=1 // pred_fallthru
      _
    // Predicated region
    $region22: #{tpu_custom_call.1} parent=1 // pred_check
      _
    $region23: #{tpu_custom_call.1} parent=1 // pred_check_branch
      %58 = sbr.rel (0) target = $region25
    $region24: #{tpu_custom_call.1} parent=1 // pred_region
      %60 = dma.done [#allocation5], 512
    $region25: #{tpu_custom_call.1} parent=1 // pred_fallthru
      _
    %v61 = vld [vmem:[#allocation2] sm:$0xff]
    %v62 = vld [vmem:[#allocation2 + $0x8] sm:$0xff]
    %v63 = vld [vmem:[#allocation4] sm:$0xff]
    %v64 = vld [vmem:[#allocation4 + $0x8] sm:$0xff]
    %v65 = vld [vmem:[#allocation6] sm:$0x1]
    %v66 = vperm.slane %v65, 0
    %vm67 = vcmask 130048
    %v69 = vsel %vm67, %v61, 0
    %v72 = vsel %vm67, %v62, 0
    %74 = vmatpush.msra.mxu0 0.0
    %75 = vmatpush.msra.mxu0 0.0
    %76 = vmatpush.msra.mxu0 0.0
    %77 = vmatpush.msra.mxu0 0.0
    %78 = vmatpush.msra.mxu0 0.0
    %79 = vmatpush.msra.mxu0 0.0
    %80 = vmatpush.msra.mxu0 0.0
    %81 = vmatpush.msra.mxu0 0.0
    %82 = vmatpush.msra.mxu0 0.0
    %83 = vmatpush.msra.mxu0 0.0
    %84 = vmatpush.msra.mxu0 0.0
    %85 = vmatpush.msra.mxu0 0.0
    %86 = vmatpush.msra.mxu0 0.0
    %87 = vmatpush.msra.mxu0 0.0
    %88 = vmatpush.msra.mxu0 %v64
    %89 = vmatpush.msra.mxu0 %v63
    %90 = vmatmul.f32.gmra.mxu0 %v69
    %v91 = vpop.f32.mrf.mxu0
    %v92 = vadd.f32 %v66, %v91
    %93 = vmatmul.f32.gmra.mxu0 %v72
    %v94 = vpop.f32.mrf.mxu0
    %v95 = vadd.f32 %v66, %v94
    %96 = vdwg.mxu0
    %v97 = vld [vmem:[#allocation6 + $0x1] sm:$0x1]
    %v98 = vld [vmem:[#allocation6 + $0x2] sm:$0x1]
    %vm99 = vcmask 261120
    %v100 = vsel %vm99, %v92, 0.0
    %101 = vadd.xlane.f32.xlu0 %v100
    %v102 = vpop.xlane.xlu0 %101
    %v103 = vsel %vm99, %v95, 0.0
    %104 = vadd.xlane.f32.xlu0 %v103
    %v105 = vpop.xlane.xlu0 %104
    %v106 = vrcp.pop 32.0
    %v107 = vmul.f32 32.0, %v106
    %v108 = vsub.f32 1.0, %v107
    %v109 = vmul.f32 %v106, %v108
    %v110 = vadd.f32 %v106, %v109
    %vm111 = vweird.f32 %v106
    %v112 = vsel %vm111, %v106, %v110
    %v113 = vmul.f32 %v102, %v112
    %v114 = vmul.f32 %v105, %v112
    %v115 = vmul.f32 %v92, %v92
    %v116 = vmul.f32 %v95, %v95
    %v117 = vsel %vm99, %v115, 0.0
    %118 = vadd.xlane.f32.xlu0 %v117
    %v119 = vpop.xlane.xlu0 %118
    %v120 = vsel %vm99, %v116, 0.0
    %121 = vadd.xlane.f32.xlu0 %v120
    %v122 = vpop.xlane.xlu0 %121
    %v123 = vmul.f32 %v119, %v112
    %v124 = vmul.f32 %v122, %v112
    %v125 = vmul.f32 %v113, %v113
    %v126 = vmul.f32 %v114, %v114
    %v127 = vsub.f32 %v123, %v125
    %v128 = vsub.f32 %v124, %v126
    %v129 = vsub.f32 %v92, %v113
    %v130 = vsub.f32 %v95, %v114
    %v131 = vadd.f32 %v127, 1e-05
    %v132 = vadd.f32 %v128, 1e-05
    %v133 = vrsqrt.pop %v131
    %v134 = vmul.f32 %v133, %v131
    %v135 = vmul.f32 %v134, %v133
    %v136 = vmul.f32 0.5, %v135
    %v137 = vsub.f32 1.5, %v136
    %v138 = vmul.f32 %v133, %v137
    %vm139 = vweird.f32 %v131
    %vm140 = vweird.f32 %v133
    %vm141 = vmor %vm139, %vm140
    %v142 = vsel %vm141, %v133, %v138
    %v143 = vrsqrt.pop %v132
    %v144 = vmul.f32 %v143, %v132
    %v145 = vmul.f32 %v144, %v143
    %v146 = vmul.f32 0.5, %v145
    %v147 = vsub.f32 1.5, %v146
    %v148 = vmul.f32 %v143, %v147
    %vm149 = vweird.f32 %v132
    %vm150 = vweird.f32 %v143
    %vm151 = vmor %vm149, %vm150
    %v152 = vsel %vm151, %v143, %v148
    %v153 = vmul.f32 %v129, %v142
    %v154 = vmul.f32 %v130, %v152
    %v155 = vperm.slane %v97, 0
    %v156 = vmul.f32 %v153, %v155
    %v157 = vmul.f32 %v154, %v155
    %v158 = vperm.slane %v98, 0
    %v159 = vadd.f32 %v156, %v158
    %v160 = vadd.f32 %v157, %v158
    %v161 = vmax.f32 %v159, 0.0
    %v162 = vmax.f32 %v160, 0.0
    %v163 = vld [vmem:[#allocation6 + $0x3] sm:$0x1]
    %v164 = vperm.slane %v163, 0
    %v165 = vadd.f32 %v161, %v164
    %v166 = vadd.f32 %v162, %v164
    %v167 = vld [vmem:[#allocation6 + $0x4] sm:$0x1]
    %v168 = vld [vmem:[#allocation6 + $0x5] sm:$0x1]
    %v169 = vsel %vm99, %v165, 0.0
    %170 = vadd.xlane.f32.xlu0 %v169
    %v171 = vpop.xlane.xlu0 %170
    %v172 = vsel %vm99, %v166, 0.0
    %173 = vadd.xlane.f32.xlu0 %v172
    %v174 = vpop.xlane.xlu0 %173
    %v175 = vmul.f32 %v171, %v112
    %v176 = vmul.f32 %v174, %v112
    %v177 = vmul.f32 %v165, %v165
    %v178 = vmul.f32 %v166, %v166
    %v179 = vsel %vm99, %v177, 0.0
    %180 = vadd.xlane.f32.xlu0 %v179
    %v181 = vpop.xlane.xlu0 %180
    %v182 = vsel %vm99, %v178, 0.0
    %183 = vadd.xlane.f32.xlu0 %v182
    %v184 = vpop.xlane.xlu0 %183
    %v185 = vmul.f32 %v181, %v112
    %v186 = vmul.f32 %v184, %v112
    %v187 = vmul.f32 %v175, %v175
    %v188 = vmul.f32 %v176, %v176
    %v189 = vsub.f32 %v185, %v187
    %v190 = vsub.f32 %v186, %v188
    %v191 = vsub.f32 %v165, %v175
    %v192 = vsub.f32 %v166, %v176
    %v193 = vadd.f32 %v189, 1e-05
    %v194 = vadd.f32 %v190, 1e-05
    %v195 = vrsqrt.pop %v193
    %v196 = vmul.f32 %v195, %v193
    %v197 = vmul.f32 %v196, %v195
    %v198 = vmul.f32 0.5, %v197
    %v199 = vsub.f32 1.5, %v198
    %v200 = vmul.f32 %v195, %v199
    %vm201 = vweird.f32 %v193
    %vm202 = vweird.f32 %v195
    %vm203 = vmor %vm201, %vm202
    %v204 = vsel %vm203, %v195, %v200
    %v205 = vrsqrt.pop %v194
    %v206 = vmul.f32 %v205, %v194
    %v207 = vmul.f32 %v206, %v205
    %v208 = vmul.f32 0.5, %v207
    %v209 = vsub.f32 1.5, %v208
    %v210 = vmul.f32 %v205, %v209
    %vm211 = vweird.f32 %v194
    %vm212 = vweird.f32 %v205
    %vm213 = vmor %vm211, %vm212
    %v214 = vsel %vm213, %v205, %v210
    %v215 = vmul.f32 %v191, %v204
    %v216 = vmul.f32 %v192, %v214
    %v217 = vperm.slane %v167, 0
    %v218 = vmul.f32 %v215, %v217
    %v219 = vmul.f32 %v216, %v217
    %v220 = vperm.slane %v168, 0
    %v221 = vadd.f32 %v218, %v220
    %v222 = vadd.f32 %v219, %v220
    %v223 = vld [vmem:[#allocation4 + $0x10] sm:$0xff]
    %v224 = vld [vmem:[#allocation4 + $0x18] sm:$0xff]
    %v225 = vld [vmem:[#allocation4 + $0x20] sm:$0xff]
    %v226 = vld [vmem:[#allocation4 + $0x28] sm:$0xff]
    %v228 = vsel %vm99, %v221, 0
    %v231 = vsel %vm99, %v222, 0
    %233 = vmatpush.msra.mxu0 0.0
    %234 = vmatpush.msra.mxu0 0.0
    %235 = vmatpush.msra.mxu0 0.0
    %236 = vmatpush.msra.mxu0 0.0
    %237 = vmatpush.msra.mxu0 0.0
    %238 = vmatpush.msra.mxu0 0.0
    %239 = vmatpush.msra.mxu0 0.0
    %240 = vmatpush.msra.mxu0 0.0
    %241 = vmatpush.msra.mxu0 0.0
    %242 = vmatpush.msra.mxu0 0.0
    %243 = vmatpush.msra.mxu0 0.0
    %244 = vmatpush.msra.mxu0 0.0
    %245 = vmatpush.msra.mxu0 %v226
    %246 = vmatpush.msra.mxu0 %v225
    %247 = vmatpush.msra.mxu0 %v224
    %248 = vmatpush.msra.mxu0 %v223
    %249 = vmatmul.f32.gmra.mxu0 %v228
    %v250 = vpop.f32.mrf.mxu0
    %v251 = vadd.f32 0.0, %v250
    %252 = vmatmul.f32.gmra.mxu0 %v231
    %v253 = vpop.f32.mrf.mxu0
    %v254 = vadd.f32 0.0, %v253
    %255 = vdwg.mxu0
    %v256 = vadd.f32 %v165, %v251
    %v257 = vadd.f32 %v166, %v254
    %v258 = vld [vmem:[#allocation6 + $0x6] sm:$0x1]
    %v259 = vperm.slane %v258, 0
    %v260 = vadd.f32 %v256, %v259
    %v261 = vadd.f32 %v257, %v259
    %v262 = vld [vmem:[#allocation6 + $0x7] sm:$0x1]
    %v263 = vld [vmem:[#allocation6 + $0x8] sm:$0x1]
    %v264 = vsel %vm99, %v260, 0.0
    %265 = vadd.xlane.f32.xlu0 %v264
    %v266 = vpop.xlane.xlu0 %265
    %v267 = vsel %vm99, %v261, 0.0
    %268 = vadd.xlane.f32.xlu0 %v267
    %v269 = vpop.xlane.xlu0 %268
    %v270 = vmul.f32 %v266, %v112
    %v271 = vmul.f32 %v269, %v112
    %v272 = vmul.f32 %v260, %v260
    %v273 = vmul.f32 %v261, %v261
    %v274 = vsel %vm99, %v272, 0.0
    %275 = vadd.xlane.f32.xlu0 %v274
    %v276 = vpop.xlane.xlu0 %275
    %v277 = vsel %vm99, %v273, 0.0
    %278 = vadd.xlane.f32.xlu0 %v277
    %v279 = vpop.xlane.xlu0 %278
    %v280 = vmul.f32 %v276, %v112
    %v281 = vmul.f32 %v279, %v112
    %v282 = vmul.f32 %v270, %v270
    %v283 = vmul.f32 %v271, %v271
    %v284 = vsub.f32 %v280, %v282
    %v285 = vsub.f32 %v281, %v283
    %v286 = vsub.f32 %v260, %v270
    %v287 = vsub.f32 %v261, %v271
    %v288 = vadd.f32 %v284, 1e-05
    %v289 = vadd.f32 %v285, 1e-05
    %v290 = vrsqrt.pop %v288
    %v291 = vmul.f32 %v290, %v288
    %v292 = vmul.f32 %v291, %v290
    %v293 = vmul.f32 0.5, %v292
    %v294 = vsub.f32 1.5, %v293
    %v295 = vmul.f32 %v290, %v294
    %vm296 = vweird.f32 %v288
    %vm297 = vweird.f32 %v290
    %vm298 = vmor %vm296, %vm297
    %v299 = vsel %vm298, %v290, %v295
    %v300 = vrsqrt.pop %v289
    %v301 = vmul.f32 %v300, %v289
    %v302 = vmul.f32 %v301, %v300
    %v303 = vmul.f32 0.5, %v302
    %v304 = vsub.f32 1.5, %v303
    %v305 = vmul.f32 %v300, %v304
    %vm306 = vweird.f32 %v289
    %vm307 = vweird.f32 %v300
    %vm308 = vmor %vm306, %vm307
    %v309 = vsel %vm308, %v300, %v305
    %v310 = vmul.f32 %v286, %v299
    %v311 = vmul.f32 %v287, %v309
    %v312 = vperm.slane %v262, 0
    %v313 = vmul.f32 %v310, %v312
    %v314 = vmul.f32 %v311, %v312
    %v315 = vperm.slane %v263, 0
    %v316 = vadd.f32 %v313, %v315
    %v317 = vadd.f32 %v314, %v315
    %v318 = vld [vmem:[#allocation4 + $0x30] sm:$0xff]
    %v319 = vld [vmem:[#allocation4 + $0x38] sm:$0xff]
    %v320 = vld [vmem:[#allocation4 + $0x40] sm:$0xff]
    %v321 = vld [vmem:[#allocation4 + $0x48] sm:$0xff]
    %v322 = vld [vmem:[#allocation6 + $0x9] sm:$0x1]
    %v323 = vperm.slane %v322, 0
    %v325 = vsel %vm99, %v316, 0
    %v328 = vsel %vm99, %v317, 0
    %330 = vmatpush.msra.mxu0 0.0
    %331 = vmatpush.msra.mxu0 0.0
    %332 = vmatpush.msra.mxu0 0.0
    %333 = vmatpush.msra.mxu0 0.0
    %334 = vmatpush.msra.mxu0 0.0
    %335 = vmatpush.msra.mxu0 0.0
    %336 = vmatpush.msra.mxu0 0.0
    %337 = vmatpush.msra.mxu0 0.0
    %338 = vmatpush.msra.mxu0 0.0
    %339 = vmatpush.msra.mxu0 0.0
    %340 = vmatpush.msra.mxu0 0.0
    %341 = vmatpush.msra.mxu0 0.0
    %342 = vmatpush.msra.mxu0 %v321
    %343 = vmatpush.msra.mxu0 %v320
    %344 = vmatpush.msra.mxu0 %v319
    %345 = vmatpush.msra.mxu0 %v318
    %346 = vmatmul.f32.gmra.mxu0 %v325
    %v347 = vpop.f32.mrf.mxu0
    %v348 = vadd.f32 %v323, %v347
    %349 = vmatmul.f32.gmra.mxu0 %v328
    %v350 = vpop.f32.mrf.mxu0
    %v351 = vadd.f32 %v323, %v350
    %352 = vdwg.mxu0
    %v353 = vmax.f32 %v348, 0.0
    %v354 = vmax.f32 %v351, 0.0
    %v355 = vld [vmem:[#allocation4 + $0x50] sm:$0xff]
    %v356 = vld [vmem:[#allocation4 + $0x58] sm:$0xff]
    %v357 = vld [vmem:[#allocation4 + $0x60] sm:$0xff]
    %v358 = vld [vmem:[#allocation4 + $0x68] sm:$0xff]
    %v359 = vld [vmem:[#allocation4 + $0x70] sm:$0xff]
    %v360 = vld [vmem:[#allocation4 + $0x78] sm:$0xff]
    %v361 = vld [vmem:[#allocation4 + $0x80] sm:$0xff]
    %v362 = vld [vmem:[#allocation4 + $0x88] sm:$0xff]
    %vm363 = vcmask 523264
    %v365 = vsel %vm363, %v353, 0
    %v368 = vsel %vm363, %v354, 0
    %370 = vmatpush.msra.mxu0 0.0
    %371 = vmatpush.msra.mxu0 0.0
    %372 = vmatpush.msra.mxu0 0.0
    %373 = vmatpush.msra.mxu0 0.0
    %374 = vmatpush.msra.mxu0 0.0
    %375 = vmatpush.msra.mxu0 0.0
    %376 = vmatpush.msra.mxu0 0.0
    %377 = vmatpush.msra.mxu0 0.0
    %378 = vmatpush.msra.mxu0 %v362
    %379 = vmatpush.msra.mxu0 %v361
    %380 = vmatpush.msra.mxu0 %v360
    %381 = vmatpush.msra.mxu0 %v359
    %382 = vmatpush.msra.mxu0 %v358
    %383 = vmatpush.msra.mxu0 %v357
    %384 = vmatpush.msra.mxu0 %v356
    %385 = vmatpush.msra.mxu0 %v355
    %386 = vmatmul.f32.gmra.mxu0 %v365
    %v387 = vpop.f32.mrf.mxu0
    %v388 = vadd.f32 0.0, %v387
    %389 = vmatmul.f32.gmra.mxu0 %v368
    %v390 = vpop.f32.mrf.mxu0
    %v391 = vadd.f32 0.0, %v390
    %392 = vdwg.mxu0
    %v393 = vadd.f32 %v260, %v388
    %v394 = vadd.f32 %v261, %v391
    %v395 = vld [vmem:[#allocation6 + $0xa] sm:$0x1]
    %v396 = vperm.slane %v395, 0
    %v397 = vadd.f32 %v393, %v396
    %v398 = vadd.f32 %v394, %v396
    %v399 = vld [vmem:[#allocation6 + $0xb] sm:$0x1]
    %v400 = vld [vmem:[#allocation6 + $0xc] sm:$0x1]
    %v401 = vsel %vm99, %v397, 0.0
    %402 = vadd.xlane.f32.xlu0 %v401
    %v403 = vpop.xlane.xlu0 %402
    %v404 = vsel %vm99, %v398, 0.0
    %405 = vadd.xlane.f32.xlu0 %v404
    %v406 = vpop.xlane.xlu0 %405
    %v407 = vmul.f32 %v403, %v112
    %v408 = vmul.f32 %v406, %v112
    %v409 = vmul.f32 %v397, %v397
    %v410 = vmul.f32 %v398, %v398
    %v411 = vsel %vm99, %v409, 0.0
    %412 = vadd.xlane.f32.xlu0 %v411
    %v413 = vpop.xlane.xlu0 %412
    %v414 = vsel %vm99, %v410, 0.0
    %415 = vadd.xlane.f32.xlu0 %v414
    %v416 = vpop.xlane.xlu0 %415
    %v417 = vmul.f32 %v413, %v112
    %v418 = vmul.f32 %v416, %v112
    %v419 = vmul.f32 %v407, %v407
    %v420 = vmul.f32 %v408, %v408
    %v421 = vsub.f32 %v417, %v419
    %v422 = vsub.f32 %v418, %v420
    %v423 = vsub.f32 %v397, %v407
    %v424 = vsub.f32 %v398, %v408
    %v425 = vadd.f32 %v421, 1e-05
    %v426 = vadd.f32 %v422, 1e-05
    %v427 = vrsqrt.pop %v425
    %v428 = vmul.f32 %v427, %v425
    %v429 = vmul.f32 %v428, %v427
    %v430 = vmul.f32 0.5, %v429
    %v431 = vsub.f32 1.5, %v430
    %v432 = vmul.f32 %v427, %v431
    %vm433 = vweird.f32 %v425
    %vm434 = vweird.f32 %v427
    %vm435 = vmor %vm433, %vm434
    %v436 = vsel %vm435, %v427, %v432
    %v437 = vrsqrt.pop %v426
    %v438 = vmul.f32 %v437, %v426
    %v439 = vmul.f32 %v438, %v437
    %v440 = vmul.f32 0.5, %v439
    %v441 = vsub.f32 1.5, %v440
    %v442 = vmul.f32 %v437, %v441
    %vm443 = vweird.f32 %v426
    %vm444 = vweird.f32 %v437
    %vm445 = vmor %vm443, %vm444
    %v446 = vsel %vm445, %v437, %v442
    %v447 = vmul.f32 %v423, %v436
    %v448 = vmul.f32 %v424, %v446
    %v449 = vperm.slane %v399, 0
    %v450 = vmul.f32 %v447, %v449
    %v451 = vmul.f32 %v448, %v449
    %v452 = vperm.slane %v400, 0
    %v453 = vadd.f32 %v450, %v452
    %v454 = vadd.f32 %v451, %v452
    %v455 = vld [vmem:[#allocation4 + $0x90] sm:$0xff]
    %v456 = vld [vmem:[#allocation4 + $0x98] sm:$0xff]
    %v457 = vld [vmem:[#allocation4 + $0xa0] sm:$0xff]
    %v458 = vld [vmem:[#allocation4 + $0xa8] sm:$0xff]
    %v460 = vsel %vm99, %v453, 0
    %v463 = vsel %vm99, %v454, 0
    %465 = vmatpush.msra.mxu0 0.0
    %466 = vmatpush.msra.mxu0 0.0
    %467 = vmatpush.msra.mxu0 0.0
    %468 = vmatpush.msra.mxu0 0.0
    %469 = vmatpush.msra.mxu0 0.0
    %470 = vmatpush.msra.mxu0 0.0
    %471 = vmatpush.msra.mxu0 0.0
    %472 = vmatpush.msra.mxu0 0.0
    %473 = vmatpush.msra.mxu0 0.0
    %474 = vmatpush.msra.mxu0 0.0
    %475 = vmatpush.msra.mxu0 0.0
    %476 = vmatpush.msra.mxu0 0.0
    %477 = vmatpush.msra.mxu0 %v458
    %478 = vmatpush.msra.mxu0 %v457
    %479 = vmatpush.msra.mxu0 %v456
    %480 = vmatpush.msra.mxu0 %v455
    %481 = vmatmul.f32.gmra.mxu0 %v460
    %v482 = vpop.f32.mrf.mxu0
    %v483 = vadd.f32 0.0, %v482
    %484 = vmatmul.f32.gmra.mxu0 %v463
    %v485 = vpop.f32.mrf.mxu0
    %v486 = vadd.f32 0.0, %v485
    %487 = vdwg.mxu0
    %v488 = vadd.f32 %v397, %v483
    %v489 = vadd.f32 %v398, %v486
    %v490 = vld [vmem:[#allocation6 + $0xd] sm:$0x1]
    %v491 = vperm.slane %v490, 0
    %v492 = vadd.f32 %v488, %v491
    %v493 = vadd.f32 %v489, %v491
    %v494 = vld [vmem:[#allocation6 + $0xe] sm:$0x1]
    %v495 = vld [vmem:[#allocation6 + $0xf] sm:$0x1]
    %v496 = vsel %vm99, %v492, 0.0
    %497 = vadd.xlane.f32.xlu0 %v496
    %v498 = vpop.xlane.xlu0 %497
    %v499 = vsel %vm99, %v493, 0.0
    %500 = vadd.xlane.f32.xlu0 %v499
    %v501 = vpop.xlane.xlu0 %500
    %v502 = vmul.f32 %v498, %v112
    %v503 = vmul.f32 %v501, %v112
    %v504 = vmul.f32 %v492, %v492
    %v505 = vmul.f32 %v493, %v493
    %v506 = vsel %vm99, %v504, 0.0
    %507 = vadd.xlane.f32.xlu0 %v506
    %v508 = vpop.xlane.xlu0 %507
    %v509 = vsel %vm99, %v505, 0.0
    %510 = vadd.xlane.f32.xlu0 %v509
    %v511 = vpop.xlane.xlu0 %510
    %v512 = vmul.f32 %v508, %v112
    %v513 = vmul.f32 %v511, %v112
    %v514 = vmul.f32 %v502, %v502
    %v515 = vmul.f32 %v503, %v503
    %v516 = vsub.f32 %v512, %v514
    %v517 = vsub.f32 %v513, %v515
    %v518 = vsub.f32 %v492, %v502
    %v519 = vsub.f32 %v493, %v503
    %v520 = vadd.f32 %v516, 1e-05
    %v521 = vadd.f32 %v517, 1e-05
    %v522 = vrsqrt.pop %v520
    %v523 = vmul.f32 %v522, %v520
    %v524 = vmul.f32 %v523, %v522
    %v525 = vmul.f32 0.5, %v524
    %v526 = vsub.f32 1.5, %v525
    %v527 = vmul.f32 %v522, %v526
    %vm528 = vweird.f32 %v520
    %vm529 = vweird.f32 %v522
    %vm530 = vmor %vm528, %vm529
    %v531 = vsel %vm530, %v522, %v527
    %v532 = vrsqrt.pop %v521
    %v533 = vmul.f32 %v532, %v521
    %v534 = vmul.f32 %v533, %v532
    %v535 = vmul.f32 0.5, %v534
    %v536 = vsub.f32 1.5, %v535
    %v537 = vmul.f32 %v532, %v536
    %vm538 = vweird.f32 %v521
    %vm539 = vweird.f32 %v532
    %vm540 = vmor %vm538, %vm539
    %v541 = vsel %vm540, %v532, %v537
    %v542 = vmul.f32 %v518, %v531
    %v543 = vmul.f32 %v519, %v541
    %v544 = vperm.slane %v494, 0
    %v545 = vmul.f32 %v542, %v544
    %v546 = vmul.f32 %v543, %v544
    %v547 = vperm.slane %v495, 0
    %v548 = vadd.f32 %v545, %v547
    %v549 = vadd.f32 %v546, %v547
    %v550 = vld [vmem:[#allocation4 + $0xb0] sm:$0xff]
    %v551 = vld [vmem:[#allocation4 + $0xb8] sm:$0xff]
    %v552 = vld [vmem:[#allocation4 + $0xc0] sm:$0xff]
    %v553 = vld [vmem:[#allocation4 + $0xc8] sm:$0xff]
    %v554 = vld [vmem:[#allocation6 + $0x10] sm:$0x1]
    %v555 = vperm.slane %v554, 0
    %v557 = vsel %vm99, %v548, 0
    %v560 = vsel %vm99, %v549, 0
    %562 = vmatpush.msra.mxu0 0.0
    %563 = vmatpush.msra.mxu0 0.0
    %564 = vmatpush.msra.mxu0 0.0
    %565 = vmatpush.msra.mxu0 0.0
    %566 = vmatpush.msra.mxu0 0.0
    %567 = vmatpush.msra.mxu0 0.0
    %568 = vmatpush.msra.mxu0 0.0
    %569 = vmatpush.msra.mxu0 0.0
    %570 = vmatpush.msra.mxu0 0.0
    %571 = vmatpush.msra.mxu0 0.0
    %572 = vmatpush.msra.mxu0 0.0
    %573 = vmatpush.msra.mxu0 0.0
    %574 = vmatpush.msra.mxu0 %v553
    %575 = vmatpush.msra.mxu0 %v552
    %576 = vmatpush.msra.mxu0 %v551
    %577 = vmatpush.msra.mxu0 %v550
    %578 = vmatmul.f32.gmra.mxu0 %v557
    %v579 = vpop.f32.mrf.mxu0
    %v580 = vadd.f32 %v555, %v579
    %581 = vmatmul.f32.gmra.mxu0 %v560
    %v582 = vpop.f32.mrf.mxu0
    %v583 = vadd.f32 %v555, %v582
    %584 = vdwg.mxu0
    %v585 = vmax.f32 %v580, 0.0
    %v586 = vmax.f32 %v583, 0.0
    %v587 = vld [vmem:[#allocation4 + $0xd0] sm:$0xff]
    %v588 = vld [vmem:[#allocation4 + $0xd8] sm:$0xff]
    %v589 = vld [vmem:[#allocation4 + $0xe0] sm:$0xff]
    %v590 = vld [vmem:[#allocation4 + $0xe8] sm:$0xff]
    %v591 = vld [vmem:[#allocation4 + $0xf0] sm:$0xff]
    %v592 = vld [vmem:[#allocation4 + $0xf8] sm:$0xff]
    %v593 = vld [vmem:[#allocation4 + $0x100] sm:$0xff]
    %v594 = vld [vmem:[#allocation4 + $0x108] sm:$0xff]
    %v596 = vsel %vm363, %v585, 0
    %v599 = vsel %vm363, %v586, 0
    %601 = vmatpush.msra.mxu0 0.0
    %602 = vmatpush.msra.mxu0 0.0
    %603 = vmatpush.msra.mxu0 0.0
    %604 = vmatpush.msra.mxu0 0.0
    %605 = vmatpush.msra.mxu0 0.0
    %606 = vmatpush.msra.mxu0 0.0
    %607 = vmatpush.msra.mxu0 0.0
    %608 = vmatpush.msra.mxu0 0.0
    %609 = vmatpush.msra.mxu0 %v594
    %610 = vmatpush.msra.mxu0 %v593
    %611 = vmatpush.msra.mxu0 %v592
    %612 = vmatpush.msra.mxu0 %v591
    %613 = vmatpush.msra.mxu0 %v590
    %614 = vmatpush.msra.mxu0 %v589
    %615 = vmatpush.msra.mxu0 %v588
    %616 = vmatpush.msra.mxu0 %v587
    %617 = vmatmul.f32.gmra.mxu0 %v596
    %v618 = vpop.f32.mrf.mxu0
    %v619 = vadd.f32 0.0, %v618
    %620 = vmatmul.f32.gmra.mxu0 %v599
    %v621 = vpop.f32.mrf.mxu0
    %v622 = vadd.f32 0.0, %v621
    %623 = vdwg.mxu0
    %v624 = vadd.f32 %v492, %v619
    %v625 = vadd.f32 %v493, %v622
    %v626 = vld [vmem:[#allocation6 + $0x11] sm:$0x1]
    %v627 = vperm.slane %v626, 0
    %v628 = vadd.f32 %v624, %v627
    %v629 = vadd.f32 %v625, %v627
    %v630 = vld [vmem:[#allocation6 + $0x12] sm:$0x1]
    %v631 = vld [vmem:[#allocation6 + $0x13] sm:$0x1]
    %v632 = vsel %vm99, %v628, 0.0
    %633 = vadd.xlane.f32.xlu0 %v632
    %v634 = vpop.xlane.xlu0 %633
    %v635 = vsel %vm99, %v629, 0.0
    %636 = vadd.xlane.f32.xlu0 %v635
    %v637 = vpop.xlane.xlu0 %636
    %v638 = vmul.f32 %v634, %v112
    %v639 = vmul.f32 %v637, %v112
    %v640 = vmul.f32 %v628, %v628
    %v641 = vmul.f32 %v629, %v629
    %v642 = vsel %vm99, %v640, 0.0
    %643 = vadd.xlane.f32.xlu0 %v642
    %v644 = vpop.xlane.xlu0 %643
    %v645 = vsel %vm99, %v641, 0.0
    %646 = vadd.xlane.f32.xlu0 %v645
    %v647 = vpop.xlane.xlu0 %646
    %v648 = vmul.f32 %v644, %v112
    %v649 = vmul.f32 %v647, %v112
    %v650 = vmul.f32 %v638, %v638
    %v651 = vmul.f32 %v639, %v639
    %v652 = vsub.f32 %v648, %v650
    %v653 = vsub.f32 %v649, %v651
    %v654 = vsub.f32 %v628, %v638
    %v655 = vsub.f32 %v629, %v639
    %v656 = vadd.f32 %v652, 1e-05
    %v657 = vadd.f32 %v653, 1e-05
    %v658 = vrsqrt.pop %v656
    %v659 = vmul.f32 %v658, %v656
    %v660 = vmul.f32 %v659, %v658
    %v661 = vmul.f32 0.5, %v660
    %v662 = vsub.f32 1.5, %v661
    %v663 = vmul.f32 %v658, %v662
    %vm664 = vweird.f32 %v656
    %vm665 = vweird.f32 %v658
    %vm666 = vmor %vm664, %vm665
    %v667 = vsel %vm666, %v658, %v663
    %v668 = vrsqrt.pop %v657
    %v669 = vmul.f32 %v668, %v657
    %v670 = vmul.f32 %v669, %v668
    %v671 = vmul.f32 0.5, %v670
    %v672 = vsub.f32 1.5, %v671
    %v673 = vmul.f32 %v668, %v672
    %vm674 = vweird.f32 %v657
    %vm675 = vweird.f32 %v668
    %vm676 = vmor %vm674, %vm675
    %v677 = vsel %vm676, %v668, %v673
    %v678 = vmul.f32 %v654, %v667
    %v679 = vmul.f32 %v655, %v677
    %v680 = vperm.slane %v630, 0
    %v681 = vmul.f32 %v678, %v680
    %v682 = vmul.f32 %v679, %v680
    %v683 = vperm.slane %v631, 0
    %v684 = vadd.f32 %v681, %v683
    %v685 = vadd.f32 %v682, %v683
    %v686 = vld [vmem:[#allocation4 + $0x110] sm:$0xff]
    %v687 = vld [vmem:[#allocation4 + $0x118] sm:$0xff]
    %v688 = vld [vmem:[#allocation4 + $0x120] sm:$0xff]
    %v689 = vld [vmem:[#allocation4 + $0x128] sm:$0xff]
    %v691 = vsel %vm99, %v684, 0
    %v694 = vsel %vm99, %v685, 0
    %696 = vmatpush.msra.mxu0 0.0
    %697 = vmatpush.msra.mxu0 0.0
    %698 = vmatpush.msra.mxu0 0.0
    %699 = vmatpush.msra.mxu0 0.0
    %700 = vmatpush.msra.mxu0 0.0
    %701 = vmatpush.msra.mxu0 0.0
    %702 = vmatpush.msra.mxu0 0.0
    %703 = vmatpush.msra.mxu0 0.0
    %704 = vmatpush.msra.mxu0 0.0
    %705 = vmatpush.msra.mxu0 0.0
    %706 = vmatpush.msra.mxu0 0.0
    %707 = vmatpush.msra.mxu0 0.0
    %708 = vmatpush.msra.mxu0 %v689
    %709 = vmatpush.msra.mxu0 %v688
    %710 = vmatpush.msra.mxu0 %v687
    %711 = vmatpush.msra.mxu0 %v686
    %712 = vmatmul.f32.gmra.mxu0 %v691
    %v713 = vpop.f32.mrf.mxu0
    %v714 = vadd.f32 0.0, %v713
    %715 = vmatmul.f32.gmra.mxu0 %v694
    %v716 = vpop.f32.mrf.mxu0
    %v717 = vadd.f32 0.0, %v716
    %718 = vdwg.mxu0
    %v719 = vadd.f32 %v628, %v714
    %v720 = vadd.f32 %v629, %v717
    %v721 = vld [vmem:[#allocation6 + $0x14] sm:$0x1]
    %v722 = vperm.slane %v721, 0
    %v723 = vadd.f32 %v719, %v722
    %v724 = vadd.f32 %v720, %v722
    %v725 = vld [vmem:[#allocation6 + $0x15] sm:$0x1]
    %v726 = vld [vmem:[#allocation6 + $0x16] sm:$0x1]
    %v727 = vsel %vm99, %v723, 0.0
    %728 = vadd.xlane.f32.xlu0 %v727
    %v729 = vpop.xlane.xlu0 %728
    %v730 = vsel %vm99, %v724, 0.0
    %731 = vadd.xlane.f32.xlu0 %v730
    %v732 = vpop.xlane.xlu0 %731
    %v733 = vmul.f32 %v729, %v112
    %v734 = vmul.f32 %v732, %v112
    %v735 = vmul.f32 %v723, %v723
    %v736 = vmul.f32 %v724, %v724
    %v737 = vsel %vm99, %v735, 0.0
    %738 = vadd.xlane.f32.xlu0 %v737
    %v739 = vpop.xlane.xlu0 %738
    %v740 = vsel %vm99, %v736, 0.0
    %741 = vadd.xlane.f32.xlu0 %v740
    %v742 = vpop.xlane.xlu0 %741
    %v743 = vmul.f32 %v739, %v112
    %v744 = vmul.f32 %v742, %v112
    %v745 = vmul.f32 %v733, %v733
    %v746 = vmul.f32 %v734, %v734
    %v747 = vsub.f32 %v743, %v745
    %v748 = vsub.f32 %v744, %v746
    %v749 = vsub.f32 %v723, %v733
    %v750 = vsub.f32 %v724, %v734
    %v751 = vadd.f32 %v747, 1e-05
    %v752 = vadd.f32 %v748, 1e-05
    %v753 = vrsqrt.pop %v751
    %v754 = vmul.f32 %v753, %v751
    %v755 = vmul.f32 %v754, %v753
    %v756 = vmul.f32 0.5, %v755
    %v757 = vsub.f32 1.5, %v756
    %v758 = vmul.f32 %v753, %v757
    %vm759 = vweird.f32 %v751
    %vm760 = vweird.f32 %v753
    %vm761 = vmor %vm759, %vm760
    %v762 = vsel %vm761, %v753, %v758
    %v763 = vrsqrt.pop %v752
    %v764 = vmul.f32 %v763, %v752
    %v765 = vmul.f32 %v764, %v763
    %v766 = vmul.f32 0.5, %v765
    %v767 = vsub.f32 1.5, %v766
    %v768 = vmul.f32 %v763, %v767
    %vm769 = vweird.f32 %v752
    %vm770 = vweird.f32 %v763
    %vm771 = vmor %vm769, %vm770
    %v772 = vsel %vm771, %v763, %v768
    %v773 = vmul.f32 %v749, %v762
    %v774 = vmul.f32 %v750, %v772
    %v775 = vperm.slane %v725, 0
    %v776 = vmul.f32 %v773, %v775
    %v777 = vmul.f32 %v774, %v775
    %v778 = vperm.slane %v726, 0
    %v779 = vadd.f32 %v776, %v778
    %v780 = vadd.f32 %v777, %v778
    %v781 = vld [vmem:[#allocation4 + $0x130] sm:$0xff]
    %v782 = vld [vmem:[#allocation4 + $0x138] sm:$0xff]
    %v783 = vld [vmem:[#allocation4 + $0x140] sm:$0xff]
    %v784 = vld [vmem:[#allocation4 + $0x148] sm:$0xff]
    %v785 = vld [vmem:[#allocation6 + $0x17] sm:$0x1]
    %v786 = vperm.slane %v785, 0
    %v788 = vsel %vm99, %v779, 0
    %v791 = vsel %vm99, %v780, 0
    %793 = vmatpush.msra.mxu0 0.0
    %794 = vmatpush.msra.mxu0 0.0
    %795 = vmatpush.msra.mxu0 0.0
    %796 = vmatpush.msra.mxu0 0.0
    %797 = vmatpush.msra.mxu0 0.0
    %798 = vmatpush.msra.mxu0 0.0
    %799 = vmatpush.msra.mxu0 0.0
    %800 = vmatpush.msra.mxu0 0.0
    %801 = vmatpush.msra.mxu0 0.0
    %802 = vmatpush.msra.mxu0 0.0
    %803 = vmatpush.msra.mxu0 0.0
    %804 = vmatpush.msra.mxu0 0.0
    %805 = vmatpush.msra.mxu0 %v784
    %806 = vmatpush.msra.mxu0 %v783
    %807 = vmatpush.msra.mxu0 %v782
    %808 = vmatpush.msra.mxu0 %v781
    %809 = vmatmul.f32.gmra.mxu0 %v788
    %v810 = vpop.f32.mrf.mxu0
    %v811 = vadd.f32 %v786, %v810
    %812 = vmatmul.f32.gmra.mxu0 %v791
    %v813 = vpop.f32.mrf.mxu0
    %v814 = vadd.f32 %v786, %v813
    %815 = vdwg.mxu0
    %v816 = vmax.f32 %v811, 0.0
    %v817 = vmax.f32 %v814, 0.0
    %v818 = vld [vmem:[#allocation4 + $0x150] sm:$0xff]
    %v819 = vld [vmem:[#allocation4 + $0x158] sm:$0xff]
    %v820 = vld [vmem:[#allocation4 + $0x160] sm:$0xff]
    %v821 = vld [vmem:[#allocation4 + $0x168] sm:$0xff]
    %v822 = vld [vmem:[#allocation4 + $0x170] sm:$0xff]
    %v823 = vld [vmem:[#allocation4 + $0x178] sm:$0xff]
    %v824 = vld [vmem:[#allocation4 + $0x180] sm:$0xff]
    %v825 = vld [vmem:[#allocation4 + $0x188] sm:$0xff]
    %v827 = vsel %vm363, %v816, 0
    %v830 = vsel %vm363, %v817, 0
    %832 = vmatpush.msra.mxu0 0.0
    %833 = vmatpush.msra.mxu0 0.0
    %834 = vmatpush.msra.mxu0 0.0
    %835 = vmatpush.msra.mxu0 0.0
    %836 = vmatpush.msra.mxu0 0.0
    %837 = vmatpush.msra.mxu0 0.0
    %838 = vmatpush.msra.mxu0 0.0
    %839 = vmatpush.msra.mxu0 0.0
    %840 = vmatpush.msra.mxu0 %v825
    %841 = vmatpush.msra.mxu0 %v824
    %842 = vmatpush.msra.mxu0 %v823
    %843 = vmatpush.msra.mxu0 %v822
    %844 = vmatpush.msra.mxu0 %v821
    %845 = vmatpush.msra.mxu0 %v820
    %846 = vmatpush.msra.mxu0 %v819
    %847 = vmatpush.msra.mxu0 %v818
    %848 = vmatmul.f32.gmra.mxu0 %v827
    %v849 = vpop.f32.mrf.mxu0
    %v850 = vadd.f32 0.0, %v849
    %851 = vmatmul.f32.gmra.mxu0 %v830
    %v852 = vpop.f32.mrf.mxu0
    %v853 = vadd.f32 0.0, %v852
    %854 = vdwg.mxu0
    %v855 = vadd.f32 %v723, %v850
    %v856 = vadd.f32 %v724, %v853
    %v857 = vld [vmem:[#allocation6 + $0x18] sm:$0x1]
    %v858 = vperm.slane %v857, 0
    %v859 = vadd.f32 %v855, %v858
    %v860 = vadd.f32 %v856, %v858
    %v861 = vld [vmem:[#allocation4 + $0x190] sm:$0xff]
    %v862 = vld [vmem:[#allocation4 + $0x198] sm:$0xff]
    %v863 = vld [vmem:[#allocation4 + $0x1a0] sm:$0xff]
    %v864 = vld [vmem:[#allocation4 + $0x1a8] sm:$0xff]
    %v865 = vld [vmem:[#allocation6 + $0x19] sm:$0x1]
    %v866 = vperm.slane %v865, 0
    %v868 = vsel %vm99, %v859, 0
    %v871 = vsel %vm99, %v860, 0
    %873 = vmatpush.msra.mxu0 0.0
    %874 = vmatpush.msra.mxu0 0.0
    %875 = vmatpush.msra.mxu0 0.0
    %876 = vmatpush.msra.mxu0 0.0
    %877 = vmatpush.msra.mxu0 0.0
    %878 = vmatpush.msra.mxu0 0.0
    %879 = vmatpush.msra.mxu0 0.0
    %880 = vmatpush.msra.mxu0 0.0
    %881 = vmatpush.msra.mxu0 0.0
    %882 = vmatpush.msra.mxu0 0.0
    %883 = vmatpush.msra.mxu0 0.0
    %884 = vmatpush.msra.mxu0 0.0
    %885 = vmatpush.msra.mxu0 %v864
    %886 = vmatpush.msra.mxu0 %v863
    %887 = vmatpush.msra.mxu0 %v862
    %888 = vmatpush.msra.mxu0 %v861
    %889 = vmatmul.f32.gmra.mxu0 %v868
    %v890 = vpop.f32.mrf.mxu0
    %v891 = vadd.f32 %v866, %v890
    %892 = vmatmul.f32.gmra.mxu0 %v871
    %v893 = vpop.f32.mrf.mxu0
    %v894 = vadd.f32 %v866, %v893
    %895 = vdwg.mxu0
    %v896 = vld [vmem:[#allocation6 + $0x1a] sm:$0x1]
    %v897 = vld [vmem:[#allocation6 + $0x1b] sm:$0x1]
    %v898 = vsel %vm67, %v891, 0.0
    %899 = vadd.xlane.f32.xlu0 %v898
    %v900 = vpop.xlane.xlu0 %899
    %v901 = vsel %vm67, %v894, 0.0
    %902 = vadd.xlane.f32.xlu0 %v901
    %v903 = vpop.xlane.xlu0 %902
    %v904 = vrcp.pop 16.0
    %v905 = vmul.f32 16.0, %v904
    %v906 = vsub.f32 1.0, %v905
    %v907 = vmul.f32 %v904, %v906
    %v908 = vadd.f32 %v904, %v907
    %vm909 = vweird.f32 %v904
    %v910 = vsel %vm909, %v904, %v908
    %v911 = vmul.f32 %v900, %v910
    %v912 = vmul.f32 %v903, %v910
    %v913 = vmul.f32 %v891, %v891
    %v914 = vmul.f32 %v894, %v894
    %v915 = vsel %vm67, %v913, 0.0
    %916 = vadd.xlane.f32.xlu0 %v915
    %v917 = vpop.xlane.xlu0 %916
    %v918 = vsel %vm67, %v914, 0.0
    %919 = vadd.xlane.f32.xlu0 %v918
    %v920 = vpop.xlane.xlu0 %919
    %v921 = vmul.f32 %v917, %v910
    %v922 = vmul.f32 %v920, %v910
    %v923 = vmul.f32 %v911, %v911
    %v924 = vmul.f32 %v912, %v912
    %v925 = vsub.f32 %v921, %v923
    %v926 = vsub.f32 %v922, %v924
    %v927 = vsub.f32 %v891, %v911
    %v928 = vsub.f32 %v894, %v912
    %v929 = vadd.f32 %v925, 1e-05
    %v930 = vadd.f32 %v926, 1e-05
    %v931 = vrsqrt.pop %v929
    %v932 = vmul.f32 %v931, %v929
    %v933 = vmul.f32 %v932, %v931
    %v934 = vmul.f32 0.5, %v933
    %v935 = vsub.f32 1.5, %v934
    %v936 = vmul.f32 %v931, %v935
    %vm937 = vweird.f32 %v929
    %vm938 = vweird.f32 %v931
    %vm939 = vmor %vm937, %vm938
    %v940 = vsel %vm939, %v931, %v936
    %v941 = vrsqrt.pop %v930
    %v942 = vmul.f32 %v941, %v930
    %v943 = vmul.f32 %v942, %v941
    %v944 = vmul.f32 0.5, %v943
    %v945 = vsub.f32 1.5, %v944
    %v946 = vmul.f32 %v941, %v945
    %vm947 = vweird.f32 %v930
    %vm948 = vweird.f32 %v941
    %vm949 = vmor %vm947, %vm948
    %v950 = vsel %vm949, %v941, %v946
    %v951 = vmul.f32 %v927, %v940
    %v952 = vmul.f32 %v928, %v950
    %v953 = vperm.slane %v896, 0
    %v954 = vmul.f32 %v951, %v953
    %v955 = vmul.f32 %v952, %v953
    %v956 = vperm.slane %v897, 0
    %v957 = vadd.f32 %v954, %v956
    %v958 = vadd.f32 %v955, %v956
    %v959 = vmax.f32 %v957, 0.0
    %v960 = vmax.f32 %v958, 0.0
    %961 = vrot.lane.b32.xlu0 %v61, 16
    %v962 = vpop.permute.xlu0 %961
    %963 = vrot.lane.b32.xlu0 %v62, 16
    %v964 = vpop.permute.xlu0 %963
    %v967 = vsel %vm67, %v959, %v962
    %v968 = vsel %vm67, %v960, %v964
    %v969 = vld [vmem:[#allocation4 + $0x1b0] sm:$0xff]
    %v970 = vld [vmem:[#allocation4 + $0x1b8] sm:$0xff]
    %v971 = vld [vmem:[#allocation4 + $0x1c0] sm:$0xff]
    %v972 = vld [vmem:[#allocation4 + $0x1c8] sm:$0xff]
    %v973 = vld [vmem:[#allocation6 + $0x1c] sm:$0x1]
    %v974 = vperm.slane %v973, 0
    %v976 = vsel %vm99, %v967, 0
    %v979 = vsel %vm99, %v968, 0
    %981 = vmatpush.msra.mxu0 0.0
    %982 = vmatpush.msra.mxu0 0.0
    %983 = vmatpush.msra.mxu0 0.0
    %984 = vmatpush.msra.mxu0 0.0
    %985 = vmatpush.msra.mxu0 0.0
    %986 = vmatpush.msra.mxu0 0.0
    %987 = vmatpush.msra.mxu0 0.0
    %988 = vmatpush.msra.mxu0 0.0
    %989 = vmatpush.msra.mxu0 0.0
    %990 = vmatpush.msra.mxu0 0.0
    %991 = vmatpush.msra.mxu0 0.0
    %992 = vmatpush.msra.mxu0 0.0
    %993 = vmatpush.msra.mxu0 %v972
    %994 = vmatpush.msra.mxu0 %v971
    %995 = vmatpush.msra.mxu0 %v970
    %996 = vmatpush.msra.mxu0 %v969
    %997 = vmatmul.f32.gmra.mxu0 %v976
    %v998 = vpop.f32.mrf.mxu0
    %v999 = vadd.f32 %v974, %v998
    %1000 = vmatmul.f32.gmra.mxu0 %v979
    %v1001 = vpop.f32.mrf.mxu0
    %v1002 = vadd.f32 %v974, %v1001
    %1003 = vdwg.mxu0
    %vm1004 = vcmask 7168
    %1005 = vst.msk [vmem:[%s3] sm:$0xff] %vm1004, %v999
    %1006 = vst.msk [vmem:[%s3 + $0x8] sm:$0xff] %vm1004, %v1002
    // Predicated region
    $region26: #{tpu_custom_call.1} parent=1 // pred_check
      _
    $region27: #{tpu_custom_call.1} parent=1 // pred_check_branch
      %1008 = sbr.rel (0) target = $region29
    $region28: #{tpu_custom_call.1} parent=1 // pred_region
      _
    $region29: #{tpu_custom_call.1} parent=1 // pred_fallthru
      _
    // Predicated region
    $region30: #{tpu_custom_call.1} parent=1 // pred_check
      _
    $region31: #{tpu_custom_call.1} parent=1 // pred_check_branch
      %1010 = sbr.rel (0) target = $region33
    $region32: #{tpu_custom_call.1} parent=1 // pred_region
      _
    $region33: #{tpu_custom_call.1} parent=1 // pred_fallthru
      _
    %1011 = vsyncpa [#allocation3], 1
    %1012 = vsyncpa [#allocation5], 1

</llo_original>
